<compile_context>
chip_gen: v6e
topology: v6e:2x2x1
jax: 0.10.0
libtpu: 0.0.40
codegen_flags: <defaults>
</compile_context>

<pallas_src>
import functools
import math

import jax
import jax.numpy as jnp
from jax import lax
from jax.experimental import pallas as pl
from jax.experimental.pallas import tpu as pltpu


_INV_SQRT2 = 1.0 / math.sqrt(2.0)


# ----------------------------- in-kernel helpers (f32 math) ------------------

def _ln_f32(x, g, b, eps):
    mean = jnp.mean(x, axis=-1, keepdims=True)
    cx = x - mean
    var = jnp.mean(cx * cx, axis=-1, keepdims=True)
    return cx * lax.rsqrt(var + eps) * g + b


def _gelu_f32(x):  # exact erf-based GELU, as in HF BERT
    return 0.5 * x * (1.0 + lax.erf(x * _INV_SQRT2))


# ----------------------------- Pallas kernels --------------------------------

def _embed_ln_kernel(we_ref, pe_ref, te_ref, g_ref, b_ref, o_ref, *, eps):
    # we: (B, S, H) bf16, pe: (S, H) f32, te: (1, H) f32, g/b: (1, H) -> o: (B, S, H) bf16
    x = (we_ref[...].astype(jnp.float32)
         + pe_ref[...][None, :, :]
         + te_ref[...][None, :, :])
    o_ref[...] = _ln_f32(x, g_ref[...], b_ref[...], eps).astype(o_ref.dtype)


def _encoder_stack_kernel(x_ref, mask_ref,
                          qkv_w_ref, qkv_b_ref,
                          ao_w_ref, ao_b_ref, ao_ln_g_ref, ao_ln_b_ref,
                          i_w_ref, i_b_ref, o_w_ref, o_b_ref,
                          o_ln_g_ref, o_ln_b_ref,
                          o_ref, h_ref, *, num_heads, head_dim, eps):
    # Grid = (B, L): one batch element per b-step, one encoder layer per l-step.
    # x: (1, S, H) bf16; mask: (1, 1, S) f32 additive; weights: layer-l blocks.
    # h_ref: (S, H) f32 VMEM scratch carrying the hidden state across the L axis.
    l = pl.program_id(1)
    S, H = x_ref.shape[1], x_ref.shape[2]

    @pl.when(l == 0)
    def _():
        h_ref[...] = x_ref[0].astype(jnp.float32)

    x_f32 = h_ref[...]                              # (S, H) f32 hidden state
    x_bf = x_f32.astype(jnp.bfloat16)
    madd = mask_ref[0]                              # (1, S) f32

    # ---- fused QKV projection (1/sqrt(Dh) pre-folded into Q weight columns) ----
    qkv = jnp.dot(x_bf, qkv_w_ref[0],
                  preferred_element_type=jnp.float32) + qkv_b_ref[0]      # (S, 3H) f32

    # ---- batched multi-head attention (head = leading batch dim) ----
    def split_heads(y):                             # (S, H) f32 -> (nH, S, Dh) bf16
        return jnp.stack(
            [y[:, h * head_dim:(h + 1) * head_dim] for h in range(num_heads)],
            axis=0).astype(jnp.bfloat16)

    q = split_heads(qkv[:, :H])
    k = split_heads(qkv[:, H:2 * H])
    v = split_heads(qkv[:, 2 * H:])

    s = jnp.einsum("hqd,hkd->hqk", q, k,
                   preferred_element_type=jnp.float32) + madd[None, :, :]  # (nH, S, S)
    s = s - jnp.max(s, axis=-1, keepdims=True)
    p = jnp.exp(s)
    p = p * pl.reciprocal(jnp.sum(p, axis=-1, keepdims=True), approx=True)
    ctx = jnp.einsum("hqk,hkd->hqd", p.astype(jnp.bfloat16), v,
                     preferred_element_type=jnp.float32)                   # (nH, S, Dh)

    # ---- merge heads (lane concat) -> ONE (S,H)@(H,H) output projection ----
    ctx_m = jnp.concatenate([ctx[h] for h in range(num_heads)],
                            axis=-1).astype(jnp.bfloat16)                  # (S, H)
    attn = jnp.dot(ctx_m, ao_w_ref[0],
                   preferred_element_type=jnp.float32) + ao_b_ref[0]

    # ---- residual + LayerNorm (f32 stats) ----
    h1 = _ln_f32(attn + x_f32, ao_ln_g_ref[0], ao_ln_b_ref[0], eps)

    # ---- FFN: gelu(h1 @ Wi + bi) @ Wo + bo, residual + LayerNorm ----
    inter = jnp.dot(h1.astype(jnp.bfloat16), i_w_ref[0],
                    preferred_element_type=jnp.float32) + i_b_ref[0]
    inter = _gelu_f32(inter)
    ffn = jnp.dot(inter.astype(jnp.bfloat16), o_w_ref[0],
                  preferred_element_type=jnp.float32) + o_b_ref[0]
    h2 = _ln_f32(ffn + h1, o_ln_g_ref[0], o_ln_b_ref[0], eps)

    h_ref[...] = h2                                  # carry to next layer

    @pl.when(l == pl.num_programs(1) - 1)
    def _():
        o_ref[0] = h2.astype(o_ref.dtype)


def _pooler_classifier_kernel(cls_ref, pw_ref, pb_ref, cw_ref, cb_ref, o_ref):
    # cls: (B, H) bf16 -> pooled = tanh(cls @ Wp + bp); logits = pooled @ Wc_pad + bc_pad
    # Wc/bc are zero-padded to 128 output lanes (lane-dense store); wrapper slices.
    pooled = jnp.dot(cls_ref[...], pw_ref[...],
                     preferred_element_type=jnp.float32) + pb_ref[...]
    pooled = jnp.tanh(pooled)
    logits = jnp.dot(pooled.astype(jnp.bfloat16), cw_ref[...],
                     preferred_element_type=jnp.float32) + cb_ref[...]
    o_ref[...] = logits


# ----------------------------- kernel wrappers --------------------------------

_LANE = 128


def _vmem_spec():
    return pl.BlockSpec(memory_space=pltpu.MemorySpace.VMEM)


def embed_layernorm(we, pe, te, g, b, eps=1e-12):
    kern = functools.partial(_embed_ln_kernel, eps=eps)
    return pl.pallas_call(
        kern,
        out_shape=jax.ShapeDtypeStruct(we.shape, jnp.bfloat16),
        in_specs=[_vmem_spec()] * 5,
        out_specs=_vmem_spec(),
    )(we, pe, te, g, b)


_ENC_WEIGHT_NAMES = ("qkv_w", "qkv_b", "ao_w", "ao_b", "ao_ln_g", "ao_ln_b",
                     "i_w", "i_b", "o_w", "o_b", "o_ln_g", "o_ln_b")


def encoder_stack(x, add_mask, enc, *, num_heads, eps=1e-12):
    """Run all L encoder layers in one pallas_call with grid=(B, L)."""
    B, S, H = x.shape
    L = enc["qkv_w"].shape[0]
    head_dim = H // num_heads
    weights = [enc[n] for n in _ENC_WEIGHT_NAMES]

    def w_spec(a):
        zeros = (0,) * (a.ndim - 1)
        # block = one layer's slab; index_map streams layer l (double-buffered prefetch).
        return pl.BlockSpec((1,) + a.shape[1:], lambda b, l, _z=zeros: (l,) + _z)

    kern = functools.partial(_encoder_stack_kernel, num_heads=num_heads,
                             head_dim=head_dim, eps=eps)
    return pl.pallas_call(
        kern,
        out_shape=jax.ShapeDtypeStruct((B, S, H), jnp.bfloat16),
        grid=(B, L),
        in_specs=[pl.BlockSpec((1, S, H), lambda b, l: (b, 0, 0)),
                  pl.BlockSpec((1, 1, S), lambda b, l: (b, 0, 0))]
                 + [w_spec(a) for a in weights],
        out_specs=pl.BlockSpec((1, S, H), lambda b, l: (b, 0, 0)),
        scratch_shapes=[pltpu.VMEM((S, H), jnp.float32)],
        compiler_params=pltpu.CompilerParams(
            dimension_semantics=("parallel", "arbitrary"),
            vmem_limit_bytes=48 * 1024 * 1024),   # stay within v7x's 64 MiB/TC
    )(x, add_mask, *weights)


def pooler_classifier(cls_tok, pw, pb, cw_pad, cb_pad, num_labels):
    B = cls_tok.shape[0]
    logits_pad = pl.pallas_call(
        _pooler_classifier_kernel,
        out_shape=jax.ShapeDtypeStruct((B, _LANE), jnp.float32),
        in_specs=[_vmem_spec()] * 5,
        out_specs=_vmem_spec(),
    )(cls_tok, pw, pb, cw_pad, cb_pad)
    return logits_pad[:, :num_labels]


# ------------------------------ model (glue) ----------------------------------

CFG = dict(vocab=50, max_pos=16, type_vocab=2, hidden=32, heads=2,
           intermediate=128, layers=2, num_labels=2)


def init_params(key, cfg):
    std = 0.02
    ks = iter(jax.random.split(key, 64))

    def dense(k, fan_in, fan_out):
        return (jax.random.normal(k, (fan_in, fan_out), jnp.float32) * std,
                jnp.zeros((1, fan_out), jnp.float32))

    H, I = cfg["hidden"], cfg["intermediate"]
    p = {
        "word_emb": jax.random.normal(next(ks), (cfg["vocab"], H), jnp.float32) * std,
        "pos_emb": jax.random.normal(next(ks), (cfg["max_pos"], H), jnp.float32) * std,
        "type_emb": jax.random.normal(next(ks), (cfg["type_vocab"], H), jnp.float32) * std,
        "emb_ln_g": jnp.ones((1, H), jnp.float32),
        "emb_ln_b": jnp.zeros((1, H), jnp.float32),
        "layers": [],
    }
    for _ in range(cfg["layers"]):
        qw, qb = dense(next(ks), H, H)
        kw, kb = dense(next(ks), H, H)
        vw, vb = dense(next(ks), H, H)
        aow, aob = dense(next(ks), H, H)
        iw, ib = dense(next(ks), H, I)
        ow, ob = dense(next(ks), I, H)
        p["layers"].append(dict(
            q_w=qw, q_b=qb, k_w=kw, k_b=kb, v_w=vw, v_b=vb,
            ao_w=aow, ao_b=aob,
            ao_ln_g=jnp.ones((1, H), jnp.float32), ao_ln_b=jnp.zeros((1, H), jnp.float32),
            i_w=iw, i_b=ib, o_w=ow, o_b=ob,
            o_ln_g=jnp.ones((1, H), jnp.float32), o_ln_b=jnp.zeros((1, H), jnp.float32),
        ))
    p["pool_w"], p["pool_b"] = dense(next(ks), H, H)
    p["cls_w"], p["cls_b"] = dense(next(ks), H, cfg["num_labels"])
    return p


def prepare_params(p, cfg):
    """Fuse Q/K/V into one (H, 3H) matmul with 1/sqrt(Dh) folded into the Q columns,
    stack per-layer weights along a leading L axis, cast matmul weights + word_emb to
    bf16, and pad the classifier to 128 output lanes. Biases / LN params stay f32."""
    H = cfg["hidden"]
    head_dim = H // cfg["heads"]
    scale = 1.0 / math.sqrt(head_dim)
    bf = lambda a: a.astype(jnp.bfloat16)

    per_layer = []
    for l in p["layers"]:
        per_layer.append(dict(
            qkv_w=bf(jnp.concatenate([l["q_w"] * scale, l["k_w"], l["v_w"]], axis=1)),
            qkv_b=jnp.concatenate([l["q_b"] * scale, l["k_b"], l["v_b"]], axis=1),
            ao_w=bf(l["ao_w"]), ao_b=l["ao_b"],
            ao_ln_g=l["ao_ln_g"], ao_ln_b=l["ao_ln_b"],
            i_w=bf(l["i_w"]), i_b=l["i_b"],
            o_w=bf(l["o_w"]), o_b=l["o_b"],
            o_ln_g=l["o_ln_g"], o_ln_b=l["o_ln_b"],
        ))
    enc = {name: jnp.stack([pl_[name] for pl_ in per_layer], axis=0)
           for name in _ENC_WEIGHT_NAMES}

    num_labels = p["cls_w"].shape[1]
    pad = _LANE - num_labels
    return {
        "word_emb": bf(p["word_emb"]),
        "pos_emb": p["pos_emb"], "type_emb": p["type_emb"],
        "emb_ln_g": p["emb_ln_g"], "emb_ln_b": p["emb_ln_b"],
        "enc": enc,
        "pool_w": bf(p["pool_w"]), "pool_b": p["pool_b"],
        "cls_w_pad": bf(jnp.pad(p["cls_w"], ((0, 0), (0, pad)))),
        "cls_b_pad": jnp.pad(p["cls_b"], ((0, 0), (0, pad))),
        "num_labels": num_labels,
    }


def bert_for_classification(params, input_ids, attention_mask, cfg=CFG):
    B, S = input_ids.shape
    nH = cfg["heads"]

    # --- embeddings ---
    # TODO(synk): data-dependent embedding gather stays in plain JAX (scalar-prefetch /
    # pl.Element gather only pays off at production S); word_emb is bf16 to halve bytes.
    we = jnp.take(params["word_emb"], input_ids, axis=0)            # (B, S, H) bf16
    pe = params["pos_emb"][:S]                                      # (S, H)
    te = params["type_emb"][0:1]                                    # (1, H) (token_type_ids = 0)
    x = embed_layernorm(we, pe, te, params["emb_ln_g"], params["emb_ln_b"])  # (B,S,H) bf16
    # dropout is a no-op in eval mode.

    # additive attention mask, built once: (B, 1, S) f32 (broadcast over heads in-kernel)
    add_mask = ((1.0 - attention_mask.astype(jnp.float32)) * -10000.0)[:, None, :]

    # --- all encoder layers in a single fused Pallas kernel, grid=(B, L) ---
    x = encoder_stack(x, add_mask, params["enc"], num_heads=nH)

    # --- pooler (tanh of dense on [CLS]) + classifier head, fused, lane-dense output ---
    cls_tok = x[:, 0, :]                                            # (B, H) bf16
    logits = pooler_classifier(cls_tok, params["pool_w"], params["pool_b"],
                               params["cls_w_pad"], params["cls_b_pad"],
                               params["num_labels"])                # (B, num_labels) f32
    return logits


# --------------------------------- main ----------------------------------------

if __name__ == "__main__":
    key = jax.random.PRNGKey(0)
    pkey, ikey = jax.random.split(key)
    params = prepare_params(init_params(pkey, CFG), CFG)

    B, S = 2, 8
    input_ids = jax.random.randint(ikey, (B, S), 0, CFG["vocab"], dtype=jnp.int32)
    attention_mask = jnp.ones((B, S), dtype=jnp.int32)

    num_labels = params.pop("num_labels")
    fwd = jax.jit(lambda p, ids, mask: bert_for_classification(
        dict(p, num_labels=num_labels), ids, mask, cfg=CFG))
    logits = fwd(params, input_ids, attention_mask)
    jax.block_until_ready(logits)
    assert logits.shape == (B, CFG["num_labels"])
    assert bool(jnp.all(jnp.isfinite(logits)))
    print("KERNEL_OK")
</pallas_src>

<mosaic_0001>
module attributes {stable_mosaic.version = 11 : i64} {
  func.func @_embed_ln_kernel(%arg0: memref<2x8x32xbf16, #tpu.memory_space<vmem>>, %arg1: memref<8x32xf32, #tpu.memory_space<vmem>>, %arg2: memref<1x32xf32, #tpu.memory_space<vmem>>, %arg3: memref<1x32xf32, #tpu.memory_space<vmem>>, %arg4: memref<1x32xf32, #tpu.memory_space<vmem>>, %arg5: memref<2x8x32xbf16, #tpu.memory_space<vmem>>) attributes {dimension_semantics = [], scalar_prefetch = 0 : i64, scratch_operands = 0 : i64, tpu.core_type = #tpu.core_type<tc>} {
    %c0 = arith.constant 0 : index
    %c0_0 = arith.constant 0 : index
    %c0_1 = arith.constant 0 : index
    %0 = vector.load %arg0[%c0, %c0_0, %c0_1] : memref<2x8x32xbf16, #tpu.memory_space<vmem>>, vector<2x8x32xbf16>
    %1 = arith.extf %0 : vector<2x8x32xbf16> to vector<2x8x32xf32>
    %c0_2 = arith.constant 0 : index
    %c0_3 = arith.constant 0 : index
    %2 = vector.load %arg1[%c0_2, %c0_3] : memref<8x32xf32, #tpu.memory_space<vmem>>, vector<8x32xf32>
    %3 = vector.shape_cast %2 : vector<8x32xf32> to vector<1x8x32xf32>
    %4 = vector.broadcast %3 : vector<1x8x32xf32> to vector<2x8x32xf32>
    %5 = arith.addf %1, %4 : vector<2x8x32xf32>
    %c0_4 = arith.constant 0 : index
    %c0_5 = arith.constant 0 : index
    %6 = vector.load %arg2[%c0_4, %c0_5] : memref<1x32xf32, #tpu.memory_space<vmem>>, vector<1x32xf32>
    %7 = vector.shape_cast %6 : vector<1x32xf32> to vector<1x1x32xf32>
    %8 = vector.broadcast %7 : vector<1x1x32xf32> to vector<2x8x32xf32>
    %9 = arith.addf %5, %8 : vector<2x8x32xf32>
    %c0_6 = arith.constant 0 : index
    %c0_7 = arith.constant 0 : index
    %10 = vector.load %arg3[%c0_6, %c0_7] : memref<1x32xf32, #tpu.memory_space<vmem>>, vector<1x32xf32>
    %c0_8 = arith.constant 0 : index
    %c0_9 = arith.constant 0 : index
    %11 = vector.load %arg4[%c0_8, %c0_9] : memref<1x32xf32, #tpu.memory_space<vmem>>, vector<1x32xf32>
    %cst = arith.constant dense<0.000000e+00> : vector<2x8xf32>
    %12 = vector.multi_reduction <add>, %9, %cst [2] : vector<2x8x32xf32> to vector<2x8xf32>
    %13 = vector.shape_cast %12 : vector<2x8xf32> to vector<2x8x1xf32>
    %cst_10 = arith.constant 3.200000e+01 : f32
    %14 = vector.broadcast %cst_10 : f32 to vector<2x8x1xf32>
    %15 = arith.divf %13, %14 : vector<2x8x1xf32>
    %16 = vector.broadcast %15 : vector<2x8x1xf32> to vector<2x8x32xf32>
    %17 = arith.subf %9, %16 : vector<2x8x32xf32>
    %18 = arith.mulf %17, %17 : vector<2x8x32xf32>
    %cst_11 = arith.constant dense<0.000000e+00> : vector<2x8xf32>
    %19 = vector.multi_reduction <add>, %18, %cst_11 [2] : vector<2x8x32xf32> to vector<2x8xf32>
    %20 = vector.shape_cast %19 : vector<2x8xf32> to vector<2x8x1xf32>
    %cst_12 = arith.constant 3.200000e+01 : f32
    %21 = vector.broadcast %cst_12 : f32 to vector<2x8x1xf32>
    %22 = arith.divf %20, %21 : vector<2x8x1xf32>
    %cst_13 = arith.constant 9.99999996E-13 : f32
    %23 = vector.broadcast %cst_13 : f32 to vector<2x8x1xf32>
    %24 = arith.addf %22, %23 : vector<2x8x1xf32>
    %25 = math.rsqrt %24 : vector<2x8x1xf32>
    %26 = vector.broadcast %25 : vector<2x8x1xf32> to vector<2x8x32xf32>
    %27 = arith.mulf %17, %26 : vector<2x8x32xf32>
    %28 = vector.shape_cast %10 : vector<1x32xf32> to vector<1x1x32xf32>
    %29 = vector.broadcast %28 : vector<1x1x32xf32> to vector<2x8x32xf32>
    %30 = arith.mulf %27, %29 : vector<2x8x32xf32>
    %31 = vector.shape_cast %11 : vector<1x32xf32> to vector<1x1x32xf32>
    %32 = vector.broadcast %31 : vector<1x1x32xf32> to vector<2x8x32xf32>
    %33 = arith.addf %30, %32 : vector<2x8x32xf32>
    %34 = arith.truncf %33 : vector<2x8x32xf32> to vector<2x8x32xbf16>
    %c0_14 = arith.constant 0 : index
    %c0_15 = arith.constant 0 : index
    %c0_16 = arith.constant 0 : index
    %35 = vector.load %arg5[%c0_14, %c0_15, %c0_16] : memref<2x8x32xbf16, #tpu.memory_space<vmem>>, vector<2x8x32xbf16>
    tpu.vector_store %arg5[%c0_14, %c0_15, %c0_16], %34 {strides = array<i32>} : memref<2x8x32xbf16, #tpu.memory_space<vmem>>, vector<2x8x32xbf16>,
    return
  }
}

module attributes {stable_mosaic.version = 11 : i64} {
  func.func @_pooler_classifier_kernel(%arg0: memref<2x32xbf16, #tpu.memory_space<vmem>>, %arg1: memref<32x32xbf16, #tpu.memory_space<vmem>>, %arg2: memref<1x32xf32, #tpu.memory_space<vmem>>, %arg3: memref<32x128xbf16, #tpu.memory_space<vmem>>, %arg4: memref<1x128xf32, #tpu.memory_space<vmem>>, %arg5: memref<2x128xf32, #tpu.memory_space<vmem>>) attributes {dimension_semantics = [], scalar_prefetch = 0 : i64, scratch_operands = 0 : i64, tpu.core_type = #tpu.core_type<tc>} {
    %c0 = arith.constant 0 : index
    %c0_0 = arith.constant 0 : index
    %0 = vector.load %arg0[%c0, %c0_0] : memref<2x32xbf16, #tpu.memory_space<vmem>>, vector<2x32xbf16>
    %c0_1 = arith.constant 0 : index
    %c0_2 = arith.constant 0 : index
    %1 = vector.load %arg1[%c0_1, %c0_2] : memref<32x32xbf16, #tpu.memory_space<vmem>>, vector<32x32xbf16>
    %cst = arith.constant dense<0.000000e+00> : vector<2x32xf32>
    %2 = tpu.matmul %0, %1, %cst {dimension_numbers = #tpu.dot_dimension_numbers<[1], [0], [0], [1], [0, 0, 1, 1], [], []>} : vector<2x32xbf16>, vector<32x32xbf16>, vector<2x32xf32> -> vector<2x32xf32>
    %c0_3 = arith.constant 0 : index
    %c0_4 = arith.constant 0 : index
    %3 = vector.load %arg2[%c0_3, %c0_4] : memref<1x32xf32, #tpu.memory_space<vmem>>, vector<1x32xf32>
    %4 = vector.broadcast %3 : vector<1x32xf32> to vector<2x32xf32>
    %5 = arith.addf %2, %4 : vector<2x32xf32>
    %6 = math.tanh %5 : vector<2x32xf32>
    %7 = arith.truncf %6 : vector<2x32xf32> to vector<2x32xbf16>
    %c0_5 = arith.constant 0 : index
    %c0_6 = arith.constant 0 : index
    %8 = vector.load %arg3[%c0_5, %c0_6] : memref<32x128xbf16, #tpu.memory_space<vmem>>, vector<32x128xbf16>
    %cst_7 = arith.constant dense<0.000000e+00> : vector<2x128xf32>
    %9 = tpu.matmul %7, %8, %cst_7 {dimension_numbers = #tpu.dot_dimension_numbers<[1], [0], [0], [1], [0, 0, 1, 1], [], []>} : vector<2x32xbf16>, vector<32x128xbf16>, vector<2x128xf32> -> vector<2x128xf32>
    %c0_8 = arith.constant 0 : index
    %c0_9 = arith.constant 0 : index
    %10 = vector.load %arg4[%c0_8, %c0_9] : memref<1x128xf32, #tpu.memory_space<vmem>>, vector<1x128xf32>
    %11 = vector.broadcast %10 : vector<1x128xf32> to vector<2x128xf32>
    %12 = arith.addf %9, %11 : vector<2x128xf32>
    %c0_10 = arith.constant 0 : index
    %c0_11 = arith.constant 0 : index
    %13 = vector.load %arg5[%c0_10, %c0_11] : memref<2x128xf32, #tpu.memory_space<vmem>>, vector<2x128xf32>
    tpu.vector_store %arg5[%c0_10, %c0_11], %12 {strides = array<i32>} : memref<2x128xf32, #tpu.memory_space<vmem>>, vector<2x128xf32>,
    return
  }
}

module attributes {stable_mosaic.version = 11 : i64} {
  func.func @_encoder_stack_kernel(%arg0: i32, %arg1: i32, %arg2: memref<1x8x32xbf16, #tpu.memory_space<vmem>>, %arg3: memref<1x1x8xf32, #tpu.memory_space<vmem>>, %arg4: memref<1x32x96xbf16, #tpu.memory_space<vmem>>, %arg5: memref<1x1x96xf32, #tpu.memory_space<vmem>>, %arg6: memref<1x32x32xbf16, #tpu.memory_space<vmem>>, %arg7: memref<1x1x32xf32, #tpu.memory_space<vmem>>, %arg8: memref<1x1x32xf32, #tpu.memory_space<vmem>>, %arg9: memref<1x1x32xf32, #tpu.memory_space<vmem>>, %arg10: memref<1x32x128xbf16, #tpu.memory_space<vmem>>, %arg11: memref<1x1x128xf32, #tpu.memory_space<vmem>>, %arg12: memref<1x128x32xbf16, #tpu.memory_space<vmem>>, %arg13: memref<1x1x32xf32, #tpu.memory_space<vmem>>, %arg14: memref<1x1x32xf32, #tpu.memory_space<vmem>>, %arg15: memref<1x1x32xf32, #tpu.memory_space<vmem>>, %arg16: memref<1x8x32xbf16, #tpu.memory_space<vmem>>, %arg17: memref<8x32xf32, #tpu.memory_space<vmem>>) attributes {dimension_semantics = [#tpu.dimension_semantics<parallel>, #tpu.dimension_semantics<arbitrary>], iteration_bounds = array<i64: 2, 2>, scalar_prefetch = 0 : i64, scratch_operands = 1 : i64, tpu.core_type = #tpu.core_type<tc>, window_params = [{transform_indices = @transform_0, window_bounds = array<i64: 1, 8, 32>}, {transform_indices = @transform_1, window_bounds = array<i64: 1, 1, 8>}, {transform_indices = @transform_2, window_bounds = array<i64: 1, 32, 96>}, {transform_indices = @transform_3, window_bounds = array<i64: 1, 1, 96>}, {transform_indices = @transform_4, window_bounds = array<i64: 1, 32, 32>}, {transform_indices = @transform_5, window_bounds = array<i64: 1, 1, 32>}, {transform_indices = @transform_6, window_bounds = array<i64: 1, 1, 32>}, {transform_indices = @transform_7, window_bounds = array<i64: 1, 1, 32>}, {transform_indices = @transform_8, window_bounds = array<i64: 1, 32, 128>}, {transform_indices = @transform_9, window_bounds = array<i64: 1, 1, 128>}, {transform_indices = @transform_10, window_bounds = array<i64: 1, 128, 32>}, {transform_indices = @transform_11, window_bounds = array<i64: 1, 1, 32>}, {transform_indices = @transform_12, window_bounds = array<i64: 1, 1, 32>}, {transform_indices = @transform_13, window_bounds = array<i64: 1, 1, 32>}, {transform_indices = @transform_14, window_bounds = array<i64: 1, 8, 32>}]} {
    %c0_i32 = arith.constant 0 : i32
    %0 = arith.cmpi eq, %arg1, %c0_i32 : i32
    %1 = arith.extui %0 : i1 to i32
    %c0_i32_0 = arith.constant 0 : i32
    %2 = arith.cmpi ne, %1, %c0_i32_0 : i32
    scf.if %2 {
      %c0_64 = arith.constant 0 : index
      %c0_65 = arith.constant 0 : index
      %c0_66 = arith.constant 0 : index
      %142 = vector.load %arg2[%c0_64, %c0_65, %c0_66] : memref<1x8x32xbf16, #tpu.memory_space<vmem>>, vector<1x8x32xbf16>
      %143 = vector.shape_cast %142 : vector<1x8x32xbf16> to vector<8x32xbf16>
      %144 = arith.extf %143 : vector<8x32xbf16> to vector<8x32xf32>
      %c0_67 = arith.constant 0 : index
      %c0_68 = arith.constant 0 : index
      %145 = vector.load %arg17[%c0_67, %c0_68] : memref<8x32xf32, #tpu.memory_space<vmem>>, vector<8x32xf32>
      tpu.vector_store %arg17[%c0_67, %c0_68], %144 {strides = array<i32>} : memref<8x32xf32, #tpu.memory_space<vmem>>, vector<8x32xf32>,
    } else {
    }
    %c0 = arith.constant 0 : index
    %c0_1 = arith.constant 0 : index
    %3 = vector.load %arg17[%c0, %c0_1] : memref<8x32xf32, #tpu.memory_space<vmem>>, vector<8x32xf32>
    %4 = arith.truncf %3 : vector<8x32xf32> to vector<8x32xbf16>
    %c0_2 = arith.constant 0 : index
    %c0_3 = arith.constant 0 : index
    %c0_4 = arith.constant 0 : index
    %5 = vector.load %arg3[%c0_2, %c0_3, %c0_4] : memref<1x1x8xf32, #tpu.memory_space<vmem>>, vector<1x1x8xf32>
    %6 = vector.shape_cast %5 : vector<1x1x8xf32> to vector<1x8xf32>
    %c0_5 = arith.constant 0 : index
    %c0_6 = arith.constant 0 : index
    %c0_7 = arith.constant 0 : index
    %7 = vector.load %arg4[%c0_5, %c0_6, %c0_7] : memref<1x32x96xbf16, #tpu.memory_space<vmem>>, vector<1x32x96xbf16>
    %8 = vector.shape_cast %7 : vector<1x32x96xbf16> to vector<32x96xbf16>
    %cst = arith.constant dense<0.000000e+00> : vector<8x96xf32>
    %9 = tpu.matmul %4, %8, %cst {dimension_numbers = #tpu.dot_dimension_numbers<[1], [0], [0], [1], [0, 0, 1, 1], [], []>} : vector<8x32xbf16>, vector<32x96xbf16>, vector<8x96xf32> -> vector<8x96xf32>
    %c0_8 = arith.constant 0 : index
    %c0_9 = arith.constant 0 : index
    %c0_10 = arith.constant 0 : index
    %10 = vector.load %arg5[%c0_8, %c0_9, %c0_10] : memref<1x1x96xf32, #tpu.memory_space<vmem>>, vector<1x1x96xf32>
    %11 = vector.shape_cast %10 : vector<1x1x96xf32> to vector<1x96xf32>
    %12 = vector.broadcast %11 : vector<1x96xf32> to vector<8x96xf32>
    %13 = arith.addf %9, %12 : vector<8x96xf32>
    %14 = vector.extract_strided_slice %13 {offsets = [0, 0], sizes = [8, 32], strides = [1, 1]} : vector<8x96xf32> to vector<8x32xf32>
    %15 = vector.extract_strided_slice %14 {offsets = [0, 0], sizes = [8, 16], strides = [1, 1]} : vector<8x32xf32> to vector<8x16xf32>
    %16 = vector.extract_strided_slice %14 {offsets = [0, 16], sizes = [8, 16], strides = [1, 1]} : vector<8x32xf32> to vector<8x16xf32>
    %17 = vector.shape_cast %15 : vector<8x16xf32> to vector<1x8x16xf32>
    %18 = vector.shape_cast %16 : vector<8x16xf32> to vector<1x8x16xf32>
    %19 = tpu.concatenate %17, %18 in 0 : vector<1x8x16xf32>, vector<1x8x16xf32> -> vector<2x8x16xf32>
    %20 = arith.truncf %19 : vector<2x8x16xf32> to vector<2x8x16xbf16>
    %21 = vector.extract_strided_slice %13 {offsets = [0, 32], sizes = [8, 32], strides = [1, 1]} : vector<8x96xf32> to vector<8x32xf32>
    %22 = vector.extract_strided_slice %21 {offsets = [0, 0], sizes = [8, 16], strides = [1, 1]} : vector<8x32xf32> to vector<8x16xf32>
    %23 = vector.extract_strided_slice %21 {offsets = [0, 16], sizes = [8, 16], strides = [1, 1]} : vector<8x32xf32> to vector<8x16xf32>
    %24 = vector.shape_cast %22 : vector<8x16xf32> to vector<1x8x16xf32>
    %25 = vector.shape_cast %23 : vector<8x16xf32> to vector<1x8x16xf32>
    %26 = tpu.concatenate %24, %25 in 0 : vector<1x8x16xf32>, vector<1x8x16xf32> -> vector<2x8x16xf32>
    %27 = arith.truncf %26 : vector<2x8x16xf32> to vector<2x8x16xbf16>
    %28 = vector.extract_strided_slice %13 {offsets = [0, 64], sizes = [8, 32], strides = [1, 1]} : vector<8x96xf32> to vector<8x32xf32>
    %29 = vector.extract_strided_slice %28 {offsets = [0, 0], sizes = [8, 16], strides = [1, 1]} : vector<8x32xf32> to vector<8x16xf32>
    %30 = vector.extract_strided_slice %28 {offsets = [0, 16], sizes = [8, 16], strides = [1, 1]} : vector<8x32xf32> to vector<8x16xf32>
    %31 = vector.shape_cast %29 : vector<8x16xf32> to vector<1x8x16xf32>
    %32 = vector.shape_cast %30 : vector<8x16xf32> to vector<1x8x16xf32>
    %33 = tpu.concatenate %31, %32 in 0 : vector<1x8x16xf32>, vector<1x8x16xf32> -> vector<2x8x16xf32>
    %34 = arith.truncf %33 : vector<2x8x16xf32> to vector<2x8x16xbf16>
    "tpu.trace_start"() <{level = 10 : i32, message = "hqd,hkd->hqk"}> : () -> ()
    %cst_11 = arith.constant dense<0.000000e+00> : vector<2x8x8xf32>
    %35 = tpu.matmul %20, %27, %cst_11 {dimension_numbers = #tpu.dot_dimension_numbers<[2], [2], [1], [1], [0, 0, 0, 1, 1, 1], [0], [0]>} : vector<2x8x16xbf16>, vector<2x8x16xbf16>, vector<2x8x8xf32> -> vector<2x8x8xf32>
    "tpu.trace_stop"() : () -> ()
    %36 = vector.shape_cast %6 : vector<1x8xf32> to vector<1x1x8xf32>
    %37 = vector.broadcast %36 : vector<1x1x8xf32> to vector<2x8x8xf32>
    %38 = arith.addf %35, %37 : vector<2x8x8xf32>
    %cst_12 = arith.constant dense<0xFF800000> : vector<2x8xf32>
    %39 = vector.multi_reduction <maximumf>, %38, %cst_12 [2] : vector<2x8x8xf32> to vector<2x8xf32>
    %40 = vector.shape_cast %39 : vector<2x8xf32> to vector<2x8x1xf32>
    %41 = vector.broadcast %40 : vector<2x8x1xf32> to vector<2x8x8xf32>
    %42 = arith.subf %38, %41 : vector<2x8x8xf32>
    %43 = math.exp %42 : vector<2x8x8xf32>
    %cst_13 = arith.constant dense<0.000000e+00> : vector<2x8xf32>
    %44 = vector.multi_reduction <add>, %43, %cst_13 [2] : vector<2x8x8xf32> to vector<2x8xf32>
    %45 = vector.shape_cast %44 : vector<2x8xf32> to vector<2x8x1xf32>
    %46 = tpu.reciprocal %45 {approx = true} : vector<2x8x1xf32> -> vector<2x8x1xf32>
    %47 = vector.broadcast %46 : vector<2x8x1xf32> to vector<2x8x8xf32>
    %48 = arith.mulf %43, %47 : vector<2x8x8xf32>
    %49 = arith.truncf %48 : vector<2x8x8xf32> to vector<2x8x8xbf16>
    "tpu.trace_start"() <{level = 10 : i32, message = "hqk,hkd->hqd"}> : () -> ()
    %cst_14 = arith.constant dense<0.000000e+00> : vector<2x8x16xf32>
    %50 = tpu.matmul %49, %34, %cst_14 {dimension_numbers = #tpu.dot_dimension_numbers<[2], [1], [1], [2], [0, 0, 0, 1, 1, 2], [0], [0]>} : vector<2x8x8xbf16>, vector<2x8x16xbf16>, vector<2x8x16xf32> -> vector<2x8x16xf32>
    "tpu.trace_stop"() : () -> ()
    %51 = vector.extract_strided_slice %50 {offsets = [0, 0, 0], sizes = [1, 8, 16], strides = [1, 1, 1]} : vector<2x8x16xf32> to vector<1x8x16xf32>
    %52 = vector.shape_cast %51 : vector<1x8x16xf32> to vector<8x16xf32>
    %53 = vector.extract_strided_slice %50 {offsets = [1, 0, 0], sizes = [1, 8, 16], strides = [1, 1, 1]} : vector<2x8x16xf32> to vector<1x8x16xf32>
    %54 = vector.shape_cast %53 : vector<1x8x16xf32> to vector<8x16xf32>
    %55 = tpu.concatenate %52, %54 in 1 : vector<8x16xf32>, vector<8x16xf32> -> vector<8x32xf32>
    %56 = arith.truncf %55 : vector<8x32xf32> to vector<8x32xbf16>
    %c0_15 = arith.constant 0 : index
    %c0_16 = arith.constant 0 : index
    %c0_17 = arith.constant 0 : index
    %57 = vector.load %arg6[%c0_15, %c0_16, %c0_17] : memref<1x32x32xbf16, #tpu.memory_space<vmem>>, vector<1x32x32xbf16>
    %58 = vector.shape_cast %57 : vector<1x32x32xbf16> to vector<32x32xbf16>
    %cst_18 = arith.constant dense<0.000000e+00> : vector<8x32xf32>
    %59 = tpu.matmul %56, %58, %cst_18 {dimension_numbers = #tpu.dot_dimension_numbers<[1], [0], [0], [1], [0, 0, 1, 1], [], []>} : vector<8x32xbf16>, vector<32x32xbf16>, vector<8x32xf32> -> vector<8x32xf32>
    %c0_19 = arith.constant 0 : index
    %c0_20 = arith.constant 0 : index
    %c0_21 = arith.constant 0 : index
    %60 = vector.load %arg7[%c0_19, %c0_20, %c0_21] : memref<1x1x32xf32, #tpu.memory_space<vmem>>, vector<1x1x32xf32>
    %61 = vector.shape_cast %60 : vector<1x1x32xf32> to vector<1x32xf32>
    %62 = vector.broadcast %61 : vector<1x32xf32> to vector<8x32xf32>
    %63 = arith.addf %59, %62 : vector<8x32xf32>
    %64 = arith.addf %63, %3 : vector<8x32xf32>
    %c0_22 = arith.constant 0 : index
    %c0_23 = arith.constant 0 : index
    %c0_24 = arith.constant 0 : index
    %65 = vector.load %arg8[%c0_22, %c0_23, %c0_24] : memref<1x1x32xf32, #tpu.memory_space<vmem>>, vector<1x1x32xf32>
    %66 = vector.shape_cast %65 : vector<1x1x32xf32> to vector<1x32xf32>
    %c0_25 = arith.constant 0 : index
    %c0_26 = arith.constant 0 : index
    %c0_27 = arith.constant 0 : index
    %67 = vector.load %arg9[%c0_25, %c0_26, %c0_27] : memref<1x1x32xf32, #tpu.memory_space<vmem>>, vector<1x1x32xf32>
    %68 = vector.shape_cast %67 : vector<1x1x32xf32> to vector<1x32xf32>
    %cst_28 = arith.constant dense<0.000000e+00> : vector<8xf32>
    %69 = vector.multi_reduction <add>, %64, %cst_28 [1] : vector<8x32xf32> to vector<8xf32>
    %70 = vector.shape_cast %69 : vector<8xf32> to vector<8x1xf32>
    %cst_29 = arith.constant 3.200000e+01 : f32
    %71 = vector.broadcast %cst_29 : f32 to vector<8x1xf32>
    %72 = arith.divf %70, %71 : vector<8x1xf32>
    %73 = vector.broadcast %72 : vector<8x1xf32> to vector<8x32xf32>
    %74 = arith.subf %64, %73 : vector<8x32xf32>
    %75 = arith.mulf %74, %74 : vector<8x32xf32>
    %cst_30 = arith.constant dense<0.000000e+00> : vector<8xf32>
    %76 = vector.multi_reduction <add>, %75, %cst_30 [1] : vector<8x32xf32> to vector<8xf32>
    %77 = vector.shape_cast %76 : vector<8xf32> to vector<8x1xf32>
    %cst_31 = arith.constant 3.200000e+01 : f32
    %78 = vector.broadcast %cst_31 : f32 to vector<8x1xf32>
    %79 = arith.divf %77, %78 : vector<8x1xf32>
    %cst_32 = arith.constant 9.99999996E-13 : f32
    %80 = vector.broadcast %cst_32 : f32 to vector<8x1xf32>
    %81 = arith.addf %79, %80 : vector<8x1xf32>
    %82 = math.rsqrt %81 : vector<8x1xf32>
    %83 = vector.broadcast %82 : vector<8x1xf32> to vector<8x32xf32>
    %84 = arith.mulf %74, %83 : vector<8x32xf32>
    %85 = vector.broadcast %66 : vector<1x32xf32> to vector<8x32xf32>
    %86 = arith.mulf %84, %85 : vector<8x32xf32>
    %87 = vector.broadcast %68 : vector<1x32xf32> to vector<8x32xf32>
    %88 = arith.addf %86, %87 : vector<8x32xf32>
    %89 = arith.truncf %88 : vector<8x32xf32> to vector<8x32xbf16>
    %c0_33 = arith.constant 0 : index
    %c0_34 = arith.constant 0 : index
    %c0_35 = arith.constant 0 : index
    %90 = vector.load %arg10[%c0_33, %c0_34, %c0_35] : memref<1x32x128xbf16, #tpu.memory_space<vmem>>, vector<1x32x128xbf16>
    %91 = vector.shape_cast %90 : vector<1x32x128xbf16> to vector<32x128xbf16>
    %cst_36 = arith.constant dense<0.000000e+00> : vector<8x128xf32>
    %92 = tpu.matmul %89, %91, %cst_36 {dimension_numbers = #tpu.dot_dimension_numbers<[1], [0], [0], [1], [0, 0, 1, 1], [], []>} : vector<8x32xbf16>, vector<32x128xbf16>, vector<8x128xf32> -> vector<8x128xf32>
    %c0_37 = arith.constant 0 : index
    %c0_38 = arith.constant 0 : index
    %c0_39 = arith.constant 0 : index
    %93 = vector.load %arg11[%c0_37, %c0_38, %c0_39] : memref<1x1x128xf32, #tpu.memory_space<vmem>>, vector<1x1x128xf32>
    %94 = vector.shape_cast %93 : vector<1x1x128xf32> to vector<1x128xf32>
    %95 = vector.broadcast %94 : vector<1x128xf32> to vector<8x128xf32>
    %96 = arith.addf %92, %95 : vector<8x128xf32>
    %cst_40 = arith.constant 5.000000e-01 : f32
    %97 = vector.broadcast %cst_40 : f32 to vector<8x128xf32>
    %98 = arith.mulf %97, %96 : vector<8x128xf32>
    %cst_41 = arith.constant 0.707106769 : f32
    %99 = vector.broadcast %cst_41 : f32 to vector<8x128xf32>
    %100 = arith.mulf %96, %99 : vector<8x128xf32>
    %101 = math.erf %100 : vector<8x128xf32>
    %cst_42 = arith.constant 1.000000e+00 : f32
    %102 = vector.broadcast %cst_42 : f32 to vector<8x128xf32>
    %103 = arith.addf %102, %101 : vector<8x128xf32>
    %104 = arith.mulf %98, %103 : vector<8x128xf32>
    %105 = arith.truncf %104 : vector<8x128xf32> to vector<8x128xbf16>
    %c0_43 = arith.constant 0 : index
    %c0_44 = arith.constant 0 : index
    %c0_45 = arith.constant 0 : index
    %106 = vector.load %arg12[%c0_43, %c0_44, %c0_45] : memref<1x128x32xbf16, #tpu.memory_space<vmem>>, vector<1x128x32xbf16>
    %107 = vector.shape_cast %106 : vector<1x128x32xbf16> to vector<128x32xbf16>
    %cst_46 = arith.constant dense<0.000000e+00> : vector<8x32xf32>
    %108 = tpu.matmul %105, %107, %cst_46 {dimension_numbers = #tpu.dot_dimension_numbers<[1], [0], [0], [1], [0, 0, 1, 1], [], []>} : vector<8x128xbf16>, vector<128x32xbf16>, vector<8x32xf32> -> vector<8x32xf32>
    %c0_47 = arith.constant 0 : index
    %c0_48 = arith.constant 0 : index
    %c0_49 = arith.constant 0 : index
    %109 = vector.load %arg13[%c0_47, %c0_48, %c0_49] : memref<1x1x32xf32, #tpu.memory_space<vmem>>, vector<1x1x32xf32>
    %110 = vector.shape_cast %109 : vector<1x1x32xf32> to vector<1x32xf32>
    %111 = vector.broadcast %110 : vector<1x32xf32> to vector<8x32xf32>
    %112 = arith.addf %108, %111 : vector<8x32xf32>
    %113 = arith.addf %112, %88 : vector<8x32xf32>
    %c0_50 = arith.constant 0 : index
    %c0_51 = arith.constant 0 : index
    %c0_52 = arith.constant 0 : index
    %114 = vector.load %arg14[%c0_50, %c0_51, %c0_52] : memref<1x1x32xf32, #tpu.memory_space<vmem>>, vector<1x1x32xf32>
    %115 = vector.shape_cast %114 : vector<1x1x32xf32> to vector<1x32xf32>
    %c0_53 = arith.constant 0 : index
    %c0_54 = arith.constant 0 : index
    %c0_55 = arith.constant 0 : index
    %116 = vector.load %arg15[%c0_53, %c0_54, %c0_55] : memref<1x1x32xf32, #tpu.memory_space<vmem>>, vector<1x1x32xf32>
    %117 = vector.shape_cast %116 : vector<1x1x32xf32> to vector<1x32xf32>
    %cst_56 = arith.constant dense<0.000000e+00> : vector<8xf32>
    %118 = vector.multi_reduction <add>, %113, %cst_56 [1] : vector<8x32xf32> to vector<8xf32>
    %119 = vector.shape_cast %118 : vector<8xf32> to vector<8x1xf32>
    %cst_57 = arith.constant 3.200000e+01 : f32
    %120 = vector.broadcast %cst_57 : f32 to vector<8x1xf32>
    %121 = arith.divf %119, %120 : vector<8x1xf32>
    %122 = vector.broadcast %121 : vector<8x1xf32> to vector<8x32xf32>
    %123 = arith.subf %113, %122 : vector<8x32xf32>
    %124 = arith.mulf %123, %123 : vector<8x32xf32>
    %cst_58 = arith.constant dense<0.000000e+00> : vector<8xf32>
    %125 = vector.multi_reduction <add>, %124, %cst_58 [1] : vector<8x32xf32> to vector<8xf32>
    %126 = vector.shape_cast %125 : vector<8xf32> to vector<8x1xf32>
    %cst_59 = arith.constant 3.200000e+01 : f32
    %127 = vector.broadcast %cst_59 : f32 to vector<8x1xf32>
    %128 = arith.divf %126, %127 : vector<8x1xf32>
    %cst_60 = arith.constant 9.99999996E-13 : f32
    %129 = vector.broadcast %cst_60 : f32 to vector<8x1xf32>
    %130 = arith.addf %128, %129 : vector<8x1xf32>
    %131 = math.rsqrt %130 : vector<8x1xf32>
    %132 = vector.broadcast %131 : vector<8x1xf32> to vector<8x32xf32>
    %133 = arith.mulf %123, %132 : vector<8x32xf32>
    %134 = vector.broadcast %115 : vector<1x32xf32> to vector<8x32xf32>
    %135 = arith.mulf %133, %134 : vector<8x32xf32>
    %136 = vector.broadcast %117 : vector<1x32xf32> to vector<8x32xf32>
    %137 = arith.addf %135, %136 : vector<8x32xf32>
    %c0_61 = arith.constant 0 : index
    %c0_62 = arith.constant 0 : index
    %138 = vector.load %arg17[%c0_61, %c0_62] : memref<8x32xf32, #tpu.memory_space<vmem>>, vector<8x32xf32>
    tpu.vector_store %arg17[%c0_61, %c0_62], %137 {strides = array<i32>} : memref<8x32xf32, #tpu.memory_space<vmem>>, vector<8x32xf32>,
    %c1_i32 = arith.constant 1 : i32
    %139 = arith.cmpi eq, %arg1, %c1_i32 : i32
    %140 = arith.extui %139 : i1 to i32
    %c0_i32_63 = arith.constant 0 : i32
    %141 = arith.cmpi ne, %140, %c0_i32_63 : i32
    scf.if %141 {
      %142 = arith.truncf %137 : vector<8x32xf32> to vector<8x32xbf16>
      %c0_64 = arith.constant 0 : index
      %c0_65 = arith.constant 0 : index
      %c0_66 = arith.constant 0 : index
      %143 = vector.load %arg16[%c0_64, %c0_65, %c0_66] : memref<1x8x32xbf16, #tpu.memory_space<vmem>>, vector<1x8x32xbf16>
      %144 = vector.shape_cast %143 : vector<1x8x32xbf16> to vector<8x32xbf16>
      %145 = vector.shape_cast %142 : vector<8x32xbf16> to vector<1x8x32xbf16>
      tpu.vector_store %arg16[%c0_64, %c0_65, %c0_66], %145 {strides = array<i32>} : memref<1x8x32xbf16, #tpu.memory_space<vmem>>, vector<1x8x32xbf16>,
    } else {
    }
    return
  }
  func.func @transform_0(%arg0: i32, %arg1: i32) -> (i32, i32, i32) {
    %c0_i32 = arith.constant 0 : i32
    %c0_i32_0 = arith.constant 0 : i32
    %c0_i32_1 = arith.constant 0 : i32
    return %arg0, %c0_i32, %c0_i32_0 : i32, i32, i32
  }
  func.func @transform_1(%arg0: i32, %arg1: i32) -> (i32, i32, i32) {
    %c0_i32 = arith.constant 0 : i32
    %c0_i32_0 = arith.constant 0 : i32
    %c0_i32_1 = arith.constant 0 : i32
    return %arg0, %c0_i32, %c0_i32_0 : i32, i32, i32
  }
  func.func @transform_2(%arg0: i32, %arg1: i32) -> (i32, i32, i32) {
    %c0_i32 = arith.constant 0 : i32
    %c0_i32_0 = arith.constant 0 : i32
    %c0_i32_1 = arith.constant 0 : i32
    return %arg1, %c0_i32, %c0_i32_0 : i32, i32, i32
  }
  func.func @transform_3(%arg0: i32, %arg1: i32) -> (i32, i32, i32) {
    %c0_i32 = arith.constant 0 : i32
    %c0_i32_0 = arith.constant 0 : i32
    %c0_i32_1 = arith.constant 0 : i32
    return %arg1, %c0_i32, %c0_i32_0 : i32, i32, i32
  }
  func.func @transform_4(%arg0: i32, %arg1: i32) -> (i32, i32, i32) {
    %c0_i32 = arith.constant 0 : i32
    %c0_i32_0 = arith.constant 0 : i32
    %c0_i32_1 = arith.constant 0 : i32
    return %arg1, %c0_i32, %c0_i32_0 : i32, i32, i32
  }
  func.func @transform_5(%arg0: i32, %arg1: i32) -> (i32, i32, i32) {
    %c0_i32 = arith.constant 0 : i32
    %c0_i32_0 = arith.constant 0 : i32
    %c0_i32_1 = arith.constant 0 : i32
    return %arg1, %c0_i32, %c0_i32_0 : i32, i32, i32
  }
  func.func @transform_6(%arg0: i32, %arg1: i32) -> (i32, i32, i32) {
    %c0_i32 = arith.constant 0 : i32
    %c0_i32_0 = arith.constant 0 : i32
    %c0_i32_1 = arith.constant 0 : i32
    return %arg1, %c0_i32, %c0_i32_0 : i32, i32, i32
  }
  func.func @transform_7(%arg0: i32, %arg1: i32) -> (i32, i32, i32) {
    %c0_i32 = arith.constant 0 : i32
    %c0_i32_0 = arith.constant 0 : i32
    %c0_i32_1 = arith.constant 0 : i32
    return %arg1, %c0_i32, %c0_i32_0 : i32, i32, i32
  }
  func.func @transform_8(%arg0: i32, %arg1: i32) -> (i32, i32, i32) {
    %c0_i32 = arith.constant 0 : i32
    %c0_i32_0 = arith.constant 0 : i32
    %c0_i32_1 = arith.constant 0 : i32
    return %arg1, %c0_i32, %c0_i32_0 : i32, i32, i32
  }
  func.func @transform_9(%arg0: i32, %arg1: i32) -> (i32, i32, i32) {
    %c0_i32 = arith.constant 0 : i32
    %c0_i32_0 = arith.constant 0 : i32
    %c0_i32_1 = arith.constant 0 : i32
    return %arg1, %c0_i32, %c0_i32_0 : i32, i32, i32
  }
  func.func @transform_10(%arg0: i32, %arg1: i32) -> (i32, i32, i32) {
    %c0_i32 = arith.constant 0 : i32
    %c0_i32_0 = arith.constant 0 : i32
    %c0_i32_1 = arith.constant 0 : i32
    return %arg1, %c0_i32, %c0_i32_0 : i32, i32, i32
  }
  func.func @transform_11(%arg0: i32, %arg1: i32) -> (i32, i32, i32) {
    %c0_i32 = arith.constant 0 : i32
    %c0_i32_0 = arith.constant 0 : i32
    %c0_i32_1 = arith.constant 0 : i32
    return %arg1, %c0_i32, %c0_i32_0 : i32, i32, i32
  }
  func.func @transform_12(%arg0: i32, %arg1: i32) -> (i32, i32, i32) {
    %c0_i32 = arith.constant 0 : i32
    %c0_i32_0 = arith.constant 0 : i32
    %c0_i32_1 = arith.constant 0 : i32
    return %arg1, %c0_i32, %c0_i32_0 : i32, i32, i32
  }
  func.func @transform_13(%arg0: i32, %arg1: i32) -> (i32, i32, i32) {
    %c0_i32 = arith.constant 0 : i32
    %c0_i32_0 = arith.constant 0 : i32
    %c0_i32_1 = arith.constant 0 : i32
    return %arg1, %c0_i32, %c0_i32_0 : i32, i32, i32
  }
  func.func @transform_14(%arg0: i32, %arg1: i32) -> (i32, i32, i32) {
    %c0_i32 = arith.constant 0 : i32
    %c0_i32_0 = arith.constant 0 : i32
    %c0_i32_1 = arith.constant 0 : i32
    return %arg0, %c0_i32, %c0_i32_0 : i32, i32, i32
  }
}

</mosaic_0001>

<llo_original>
// kernel: _lambda_.3
$region0: #{_lambda_.3}
  #allocation0 [shape = 'u32[]', space=smem, size = 0x4, offset = 0x4, fixed_abs, tag = 'smem constant byte address 0x4 - core index']
  #allocation1 [shape = 'u32[144,128]{1,0:T(1,128)}', space=vmem, size = 0x12000, scoped, tag = 'internal scratch']
  %s0 = inlined_call_operand.vmem [shape: bf16[2,8,32], index: 0, kind: input, shape index: {}]
  %s1 = inlined_call_operand.vmem [shape: f32[8,32], index: 1, kind: input, shape index: {}]
  %s2 = inlined_call_operand.vmem [shape: f32[1,32], index: 2, kind: input, shape index: {}]
  %s3 = inlined_call_operand.vmem [shape: f32[1,32], index: 3, kind: input, shape index: {}]
  %s4 = inlined_call_operand.vmem [shape: f32[1,32], index: 4, kind: input, shape index: {}]
  %s5 = inlined_call_operand.vmem [shape: bf16[2,8,32], index: 5, kind: output, shape index: {}]
  %s6 = sld [smem:[#allocation0]]
  $region30: #{_lambda_.3} parent=0
    _
  %s8 = ssub.s32 1, %s6
  %s9 = scalar_select 0, %s8, %s6
  // Predicated region
  $region2: #{_lambda_.3} parent=0 // pred_check
    _
  $region3: #{_lambda_.3} parent=0 // pred_check_branch
    %11 = sbr.rel (0) target = $region5
  $region4: #{_lambda_.3} parent=0 // pred_region
    _
  $region5: #{_lambda_.3} parent=0 // pred_fallthru
    _
  // Predicated region
  $region6: #{_lambda_.3} parent=0 // pred_check
    _
  $region7: #{_lambda_.3} parent=0 // pred_check_branch
    %13 = sbr.rel (0) target = $region9
  $region8: #{_lambda_.3} parent=0 // pred_region
    _
  $region9: #{_lambda_.3} parent=0 // pred_fallthru
    _
  // Predicated region
  $region10: #{_lambda_.3} parent=0 // pred_check
    _
  $region11: #{_lambda_.3} parent=0 // pred_check_branch
    %15 = sbr.rel (0) target = $region13
  $region12: #{_lambda_.3} parent=0 // pred_region
    _
  $region13: #{_lambda_.3} parent=0 // pred_fallthru
    _
  // Predicated region
  $region14: #{_lambda_.3} parent=0 // pred_check
    _
  $region15: #{_lambda_.3} parent=0 // pred_check_branch
    %17 = sbr.rel (0) target = $region17
  $region16: #{_lambda_.3} parent=0 // pred_region
    _
  $region17: #{_lambda_.3} parent=0 // pred_fallthru
    _
  // Predicated region
  $region18: #{_lambda_.3} parent=0 // pred_check
    _
  $region19: #{_lambda_.3} parent=0 // pred_check_branch
    %19 = sbr.rel (0) target = $region21
  $region20: #{_lambda_.3} parent=0 // pred_region
    _
  $region21: #{_lambda_.3} parent=0 // pred_fallthru
    _
  %v20 = vld [vmem:[%s0] sm:$0xf]
  %v21 = vld [vmem:[%s0 + $0x4] sm:$0xf]
  %v22 = vunpack.c.l.bf16 %v20
  %v23 = vunpack.c.l.bf16 %v21
  %v24 = vld [vmem:[%s1] sm:$0xff]
  %v25 = vadd.f32 %v22, %v24
  %v26 = vadd.f32 %v23, %v24
  %v27 = vld [vmem:[%s2] sm:$0x1]
  %v29 = vlaneseq
  %v30 = vshrl.u32 %v29, 7
  %v31 = vsub.s32 0, %v30
  %v32 = vrot.slane %v27, %v31
  %v34 = vadd.f32 %v25, %v32
  %v35 = vadd.f32 %v26, %v32
  %v36 = vld [vmem:[%s3] sm:$0x1]
  %v37 = vld [vmem:[%s4] sm:$0x1]
  %vm38 = vcmask 261120
  %v39 = vsel %vm38, %v34, 0.0
  %40 = vadd.xlane.f32.xlu0 %v39
  %v41 = vpop.xlane.xlu0 %40
  %v42 = vsel %vm38, %v35, 0.0
  %43 = vadd.xlane.f32.xlu0 %v42
  %v44 = vpop.xlane.xlu0 %43
  %v45 = vrcp.pop 32.0
  %v46 = vmul.f32 %v41, %v45
  %v47 = vmul.f32 %v44, %v45
  %v48 = vsub.f32 %v34, %v46
  %v49 = vsub.f32 %v35, %v47
  %v50 = vmul.f32 %v48, %v48
  %v51 = vmul.f32 %v49, %v49
  %v52 = vsel %vm38, %v50, 0.0
  %53 = vadd.xlane.f32.xlu0 %v52
  %v54 = vpop.xlane.xlu0 %53
  %v55 = vsel %vm38, %v51, 0.0
  %56 = vadd.xlane.f32.xlu0 %v55
  %v57 = vpop.xlane.xlu0 %56
  %v58 = vmul.f32 %v54, %v45
  %v59 = vmul.f32 %v57, %v45
  %v60 = vadd.f32 %v58, 1e-12
  %v61 = vadd.f32 %v59, 1e-12
  %v62 = vrsqrt.pop %v60
  %v63 = vrsqrt.pop %v61
  %v64 = vmul.f32 %v48, %v62
  %v65 = vmul.f32 %v49, %v63
  %v67 = vlaneseq
  %v68 = vshrl.u32 %v67, 7
  %v69 = vsub.s32 0, %v68
  %v70 = vrot.slane %v36, %v69
  %v72 = vmul.f32 %v64, %v70
  %v73 = vmul.f32 %v65, %v70
  %v75 = vlaneseq
  %v76 = vshrl.u32 %v75, 7
  %v77 = vsub.s32 0, %v76
  %v78 = vrot.slane %v37, %v77
  %v80 = vadd.f32 %v72, %v78
  %v81 = vadd.f32 %v73, %v78
  %v82 = vpack.c.bf16 %v80, %v80
  %v83 = vpack.c.bf16 %v81, %v81
  %vm84 = vcmask 257024
  %85 = vst.msk [vmem:[%s5] sm:$0xf] %vm84, %v82
  %86 = vst.msk [vmem:[%s5 + $0x4] sm:$0xf] %vm84, %v83
  // Predicated region
  $region22: #{_lambda_.3} parent=0 // pred_check
    _
  $region23: #{_lambda_.3} parent=0 // pred_check_branch
    %88 = sbr.rel (0) target = $region25
  $region24: #{_lambda_.3} parent=0 // pred_region
    _
  $region25: #{_lambda_.3} parent=0 // pred_fallthru
    _
  // Predicated region
  $region26: #{_lambda_.3} parent=0 // pred_check
    _
  $region27: #{_lambda_.3} parent=0 // pred_check_branch
    %90 = sbr.rel (0) target = $region29
  $region28: #{_lambda_.3} parent=0 // pred_region
    _
  $region29: #{_lambda_.3} parent=0 // pred_fallthru
    _

// kernel: _lambda_.5
$region0: #{_lambda_.5}
  #allocation0 [shape = 'u32[]', space=smem, size = 0x4, offset = 0x4, fixed_abs, tag = 'smem constant byte address 0x4 - core index']
  #allocation1 [shape = 'u32[144,128]{1,0:T(1,128)}', space=vmem, size = 0x12000, scoped, tag = 'internal scratch']
  %s0 = inlined_call_operand.vmem [shape: bf16[2,32], index: 0, kind: input, shape index: {}]
  %s1 = inlined_call_operand.vmem [shape: bf16[32,32], index: 1, kind: input, shape index: {}]
  %s2 = inlined_call_operand.vmem [shape: f32[1,32], index: 2, kind: input, shape index: {}]
  %s3 = inlined_call_operand.vmem [shape: bf16[32,128], index: 3, kind: input, shape index: {}]
  %s4 = inlined_call_operand.vmem [shape: f32[1,128], index: 4, kind: input, shape index: {}]
  %s5 = inlined_call_operand.hbm [shape: f32[2,128], index: 5, kind: output, shape index: {}]
  %s6 = sld [smem:[#allocation0]]
  $region30: #{_lambda_.5} parent=0
    _
  %s8 = ssub.s32 1, %s6
  %s9 = scalar_select 0, %s8, %s6
  $region1: #{_lambda_.5} parent=0
    #allocation2 [shape = 'u8[1024]{0}', space=vmem, size = 0x400, scoped, tag = 'output window, operand 0, single buffered']
    #allocation3 [shape = 's32[1]{0}', space=sflag, size = 0x4, scoped, tag = 'scoped memory for _lambda_.5']
    %10 = vsyncpa [#allocation3], 0
    // Predicated region
    $region2: #{_lambda_.5} parent=1 // pred_check
      _
    $region3: #{_lambda_.5} parent=1 // pred_check_branch
      %12 = sbr.rel (0) target = $region5
    $region4: #{_lambda_.5} parent=1 // pred_region
      _
    $region5: #{_lambda_.5} parent=1 // pred_fallthru
      _
    // Predicated region
    $region6: #{_lambda_.5} parent=1 // pred_check
      _
    $region7: #{_lambda_.5} parent=1 // pred_check_branch
      %14 = sbr.rel (0) target = $region9
    $region8: #{_lambda_.5} parent=1 // pred_region
      _
    $region9: #{_lambda_.5} parent=1 // pred_fallthru
      _
    // Predicated region
    $region10: #{_lambda_.5} parent=1 // pred_check
      _
    $region11: #{_lambda_.5} parent=1 // pred_check_branch
      %16 = sbr.rel (0) target = $region13
    $region12: #{_lambda_.5} parent=1 // pred_region
      _
    $region13: #{_lambda_.5} parent=1 // pred_fallthru
      _
    // Predicated region
    $region14: #{_lambda_.5} parent=1 // pred_check
      _
    $region15: #{_lambda_.5} parent=1 // pred_check_branch
      %18 = sbr.rel (0) target = $region17
    $region16: #{_lambda_.5} parent=1 // pred_region
      _
    $region17: #{_lambda_.5} parent=1 // pred_fallthru
      _
    // Predicated region
    $region18: #{_lambda_.5} parent=1 // pred_check
      _
    $region19: #{_lambda_.5} parent=1 // pred_check_branch
      %20 = sbr.rel (0) target = $region21
    $region20: #{_lambda_.5} parent=1 // pred_region
      _
    $region21: #{_lambda_.5} parent=1 // pred_fallthru
      _
    %v22 = vld [vmem:[%s0] sm:$0x1]
    %v23 = vld [vmem:[%s1] sm:$0xf]
    %v24 = vld [vmem:[%s1 + $0x4] sm:$0xf]
    %v25 = vld [vmem:[%s1 + $0x8] sm:$0xf]
    %v26 = vld [vmem:[%s1 + $0xc] sm:$0xf]
    %v27 = vld [vmem:[%s2] sm:$0x1]
    %v29 = vlaneseq
    %v30 = vshrl.u32 %v29, 7
    %v31 = vsub.s32 0, %v30
    %v32 = vrot.slane %v27, %v31
    %v38 = vunpack.c.l.b16 %v23
    %v39 = vunpack.c.l.b16 %v24
    %v40 = vunpack.c.l.b16 %v25
    %v41 = vunpack.c.l.b16 %v26
    %v42 = vpack.c.b16 %v39, %v38
    %v43 = vpack.c.b16 %v41, %v40
    %vm46 = vcmask 261120
    %v48 = vsel %vm46, %v22, 0
    %50 = vmatprep.subr.bf16.mxu0 0
    %51 = vmatpush1.bf16.msra.mxu0 0
    %52 = vmatprep.subr.bf16.mxu0 0
    %53 = vmatpush1.bf16.msra.mxu0 0
    %54 = vmatprep.subr.bf16.mxu0 0
    %55 = vmatpush1.bf16.msra.mxu0 0
    %56 = vmatprep.subr.bf16.mxu0 0
    %57 = vmatpush1.bf16.msra.mxu0 0
    %58 = vmatprep.subr.bf16.mxu0 0
    %59 = vmatpush1.bf16.msra.mxu0 0
    %60 = vmatprep.subr.bf16.mxu0 0
    %61 = vmatpush1.bf16.msra.mxu0 0
    %62 = vmatprep.subr.bf16.mxu0 0
    %63 = vmatpush1.bf16.msra.mxu0 %v43
    %64 = vmatprep.subr.bf16.mxu0 0
    %65 = vmatpush1.bf16.msra.mxu0 %v42
    %66 = vmatprep.subr.bf16.mxu0 0
    %67 = vmatpush2.bf16.msra.mxu0 0
    %68 = vmatprep.subr.bf16.mxu0 0
    %69 = vmatpush2.bf16.msra.mxu0 0
    %70 = vmatprep.subr.bf16.mxu0 0
    %71 = vmatpush2.bf16.msra.mxu0 0
    %72 = vmatprep.subr.bf16.mxu0 0
    %73 = vmatpush2.bf16.msra.mxu0 0
    %74 = vmatprep.subr.bf16.mxu0 0
    %75 = vmatpush2.bf16.msra.mxu0 0
    %76 = vmatprep.subr.bf16.mxu0 0
    %77 = vmatpush2.bf16.msra.mxu0 0
    %78 = vmatprep.subr.bf16.mxu0 0
    %79 = vmatpush2.bf16.msra.mxu0 0
    %80 = vmatprep.subr.bf16.mxu0 0
    %81 = vmatpush2.bf16.msra.mxu0 0
    %82 = vmatprep.mubr.bf16.mxu0 0
    %83 = vmatmul.mubr.bf16.gmra.mxu0 %v48
    %v84 = vpop.f32.mrf.mxu0
    %v85 = vadd.f32 %v32, %v84
    %v86 = vpop.f32.mrf.mxu0
    %v87 = vpop.f32.mrf.mxu0
    %v88 = vpop.f32.mrf.mxu0
    %89 = vdwg.mxu0
    %v90 = vtanh.pop %v85
    %v91 = vpack.c.bf16 %v90, %v90
    %v92 = vld [vmem:[%s3] sm:$0xf]
    %v93 = vld [vmem:[%s3 + $0x4] sm:$0xf]
    %v94 = vld [vmem:[%s3 + $0x8] sm:$0xf]
    %v95 = vld [vmem:[%s3 + $0xc] sm:$0xf]
    %v96 = vld [vmem:[%s4] sm:$0x1]
    %v98 = vlaneseq
    %v99 = vshrl.u32 %v98, 7
    %v100 = vsub.s32 0, %v99
    %v101 = vrot.slane %v96, %v100
    %v107 = vunpack.c.l.b16 %v92
    %v108 = vunpack.c.l.b16 %v93
    %v109 = vunpack.c.l.b16 %v94
    %v110 = vunpack.c.l.b16 %v95
    %v111 = vpack.c.b16 %v108, %v107
    %v112 = vpack.c.b16 %v110, %v109
    %v116 = vsel %vm46, %v91, 0
    %118 = vmatprep.subr.bf16.mxu0 0
    %119 = vmatpush1.bf16.msra.mxu0 0
    %120 = vmatprep.subr.bf16.mxu0 0
    %121 = vmatpush1.bf16.msra.mxu0 0
    %122 = vmatprep.subr.bf16.mxu0 0
    %123 = vmatpush1.bf16.msra.mxu0 0
    %124 = vmatprep.subr.bf16.mxu0 0
    %125 = vmatpush1.bf16.msra.mxu0 0
    %126 = vmatprep.subr.bf16.mxu0 0
    %127 = vmatpush1.bf16.msra.mxu0 0
    %128 = vmatprep.subr.bf16.mxu0 0
    %129 = vmatpush1.bf16.msra.mxu0 0
    %130 = vmatprep.subr.bf16.mxu0 0
    %131 = vmatpush1.bf16.msra.mxu0 %v112
    %132 = vmatprep.subr.bf16.mxu0 0
    %133 = vmatpush1.bf16.msra.mxu0 %v111
    %134 = vmatprep.subr.bf16.mxu0 0
    %135 = vmatpush2.bf16.msra.mxu0 0
    %136 = vmatprep.subr.bf16.mxu0 0
    %137 = vmatpush2.bf16.msra.mxu0 0
    %138 = vmatprep.subr.bf16.mxu0 0
    %139 = vmatpush2.bf16.msra.mxu0 0
    %140 = vmatprep.subr.bf16.mxu0 0
    %141 = vmatpush2.bf16.msra.mxu0 0
    %142 = vmatprep.subr.bf16.mxu0 0
    %143 = vmatpush2.bf16.msra.mxu0 0
    %144 = vmatprep.subr.bf16.mxu0 0
    %145 = vmatpush2.bf16.msra.mxu0 0
    %146 = vmatprep.subr.bf16.mxu0 0
    %147 = vmatpush2.bf16.msra.mxu0 0
    %148 = vmatprep.subr.bf16.mxu0 0
    %149 = vmatpush2.bf16.msra.mxu0 0
    %150 = vmatprep.mubr.bf16.mxu0 0
    %151 = vmatmul.mubr.bf16.gmra.mxu0 %v116
    %v152 = vpop.f32.mrf.mxu0
    %v153 = vadd.f32 %v101, %v152
    %v154 = vpop.f32.mrf.mxu0
    %v155 = vpop.f32.mrf.mxu0
    %v156 = vpop.f32.mrf.mxu0
    %157 = vdwg.mxu0
    %158 = vst [vmem:[#allocation2] sm:$0x3] %v153
    // Predicated region
    $region22: #{_lambda_.5} parent=1 // pred_check
      _
    $region23: #{_lambda_.5} parent=1 // pred_check_branch
      %160 = sbr.rel (0) target = $region25
    $region24: #{_lambda_.5} parent=1 // pred_region
      %s162 = ssub.s32 32, 32
      %163 = vsyncadd [#allocation3], %s162
      %s165 = sshll.u32 [#allocation2], 4
      %s166 = int_to_ptr.vmem [resolvable:$true] %s165
      %168 = dma.vmem_to_hbm [thread:$0]  %s166, 32, %s5, [#allocation3]
    $region25: #{_lambda_.5} parent=1 // pred_fallthru
      _
    // Predicated region
    $region26: #{_lambda_.5} parent=1 // pred_check
      _
    $region27: #{_lambda_.5} parent=1 // pred_check_branch
      %170 = sbr.rel (0) target = $region29
    $region28: #{_lambda_.5} parent=1 // pred_region
      %171 = dma.done [#allocation3], 32
    $region29: #{_lambda_.5} parent=1 // pred_fallthru
      _
    %172 = vsyncpa [#allocation3], 1

// kernel: _lambda_.4
$region0: #{_lambda_.4}
  #allocation0 [shape = 'u32[]', space=smem, size = 0x4, offset = 0x4, fixed_abs, tag = 'smem constant byte address 0x4 - core index']
  #allocation1 [shape = 'u32[144,128]{1,0:T(1,128)}', space=vmem, size = 0x12000, scoped, tag = 'internal scratch']
  #allocation2 [shape = 'f32[8,32]{1,0:T(8,128)}', space=vmem, size = 0x1000, scoped, tag = 'scratch operand']
  %s0 = inlined_call_operand.vmem [shape: bf16[2,8,32], index: 0, kind: input, shape index: {}]
  %s1 = inlined_call_operand.vmem [shape: f32[2,1,8], index: 1, kind: input, shape index: {}]
  %s2 = inlined_call_operand.vmem [shape: bf16[2,32,96], index: 2, kind: input, shape index: {}]
  %s3 = inlined_call_operand.vmem [shape: f32[2,1,96], index: 3, kind: input, shape index: {}]
  %s4 = inlined_call_operand.vmem [shape: bf16[2,32,32], index: 4, kind: input, shape index: {}]
  %s5 = inlined_call_operand.vmem [shape: f32[2,1,32], index: 5, kind: input, shape index: {}]
  %s6 = inlined_call_operand.vmem [shape: f32[2,1,32], index: 6, kind: input, shape index: {}]
  %s7 = inlined_call_operand.vmem [shape: f32[2,1,32], index: 7, kind: input, shape index: {}]
  %s8 = inlined_call_operand.vmem [shape: bf16[2,32,128], index: 8, kind: input, shape index: {}]
  %s9 = inlined_call_operand.vmem [shape: f32[2,1,128], index: 9, kind: input, shape index: {}]
  %s10 = inlined_call_operand.vmem [shape: bf16[2,128,32], index: 10, kind: input, shape index: {}]
  %s11 = inlined_call_operand.vmem [shape: f32[2,1,32], index: 11, kind: input, shape index: {}]
  %s12 = inlined_call_operand.vmem [shape: f32[2,1,32], index: 12, kind: input, shape index: {}]
  %s13 = inlined_call_operand.vmem [shape: f32[2,1,32], index: 13, kind: input, shape index: {}]
  %s14 = inlined_call_operand.vmem [shape: bf16[2,8,32], index: 14, kind: output, shape index: {}]
  %s15 = sld [smem:[#allocation0]]
  $region97: #{_lambda_.4} parent=0
    _
  %s17 = ssub.s32 1, %s15
  %s18 = scalar_select 0, %s17, %s15
  loop: start=0, step=1, limit=6
  $region2: #{_lambda_.4} parent=0 // loop_pre_header
    _
  $region3: #{_lambda_.4} parent=0 // loop_header
    %s20 = sphi 0, %s24
    %p21 = scmp.ge.s32.totalorder %s20, 6
    %s27 = sphi 0, %s39
    %s28 = sphi 0, %s35
    %s29 = sphi 0, %s27
    %s30 = sphi 0, %s28
    %s31 = sphi 0, %s29
    %s32 = sphi 0, %s30
    %s42 = sphi 0, %s44
    %s45 = sphi 0, %s42
    %s46 = sphi 0, %s45
    %s62 = sphi 0, %s46
    %s68 = sphi 0, %s70
    %s71 = sphi 0, %s68
    %s72 = sphi 0, %s71
    %s88 = sphi 0, %s72
    %s94 = sphi 0, %s96
    %s97 = sphi 0, %s94
    %s98 = sphi 0, %s97
    %s114 = sphi 0, %s98
    %s120 = sphi 0, %s122
    %s123 = sphi 0, %s120
    %s124 = sphi 0, %s123
    %s140 = sphi 0, %s124
    %s146 = sphi 0, %s148
    %s149 = sphi 0, %s146
    %s150 = sphi 0, %s149
    %s166 = sphi 0, %s150
    %s172 = sphi 0, %s174
    %s175 = sphi 0, %s172
    %s176 = sphi 0, %s175
    %s192 = sphi 0, %s176
    %s198 = sphi 0, %s200
    %s201 = sphi 0, %s198
    %s202 = sphi 0, %s201
    %s218 = sphi 0, %s202
    %s224 = sphi 0, %s226
    %s227 = sphi 0, %s224
    %s228 = sphi 0, %s227
    %s244 = sphi 0, %s228
    %s250 = sphi 0, %s252
    %s253 = sphi 0, %s250
    %s254 = sphi 0, %s253
    %s270 = sphi 0, %s254
    %s276 = sphi 0, %s278
    %s279 = sphi 0, %s276
    %s280 = sphi 0, %s279
    %s296 = sphi 0, %s280
    %s302 = sphi 0, %s304
    %s305 = sphi 0, %s302
    %s306 = sphi 0, %s305
    %s322 = sphi 0, %s306
    %s328 = sphi 0, %s330
    %s331 = sphi 0, %s328
    %s332 = sphi 0, %s331
    %s348 = sphi 0, %s332
    %s354 = sphi 0, %s356
    %s357 = sphi 0, %s354
    %s358 = sphi 0, %s357
    %s374 = sphi 0, %s358
    %s380 = sphi 0, %s382
    %s383 = sphi 0, %s380
    %s384 = sphi 0, %s383
    %s400 = sphi 0, %s384
    %s406 = sphi 0, %s408
    %s409 = sphi 0, %s406
    %s410 = sphi 0, %s409
    %s426 = sphi 0, %s410
  $region4: #{_lambda_.4} parent=0 // loop_header_branch
    %23 = sbr.rel (%p21) target = $region8
  $region5: #{_lambda_.4} parent=0 // loop_body
    %s25 = ssub.s32 %s20, 1
    %s26 = ssub.s32 %s20, 2
    %s33 = sadd.s32 1, %s28
    %p34 = scmp.ge.s32.totalorder %s33, 2
    %s35 = scalar_select %p34, 0, %s33
    %s36 = sadd.s32 1, %s27
    %s37 = scalar_select %p34, %s36, %s27
    %p38 = scmp.ge.s32.totalorder %s37, 2
    %s39 = scalar_select %p38, 0, %s37
    %s40 = ssub.s32 %s27, %s39
    %p41 = scmp.eq.s32.totalorder %s40, 0
    %s43 = sadd.s32 %s42, 1
    %s44 = scalar_select %p41, %s42, %s43
    %p47 = pneg %p41
    %p48 = scmp.eq.s32.totalorder %s20, 3
    %p49 = por %p47, %p48
    %p50 = scmp.ne.s32.totalorder %s42, %s45
    %p51 = scmp.eq.s32.totalorder %s20, 0
    %p52 = por %p50, %p51
    %p53 = scmp.ne.s32.totalorder %s42, %s45
    %p54 = scmp.eq.s32.totalorder %s25, 3
    %p55 = por %p53, %p54
    %p56 = scmp.ne.s32.totalorder %s45, %s46
    %p57 = scmp.eq.s32.totalorder %s25, 0
    %p58 = por %p56, %p57
    %p59 = scmp.ne.s32.totalorder %s45, %s46
    %p60 = scmp.eq.s32.totalorder %s26, 3
    %p61 = por %p59, %p60
    %p63 = scmp.ne.s32.totalorder %s46, %s62
    %p64 = scmp.eq.s32.totalorder %s26, 0
    %p65 = por %p63, %p64
    %s66 = ssub.s32 %s27, %s39
    %p67 = scmp.eq.s32.totalorder %s66, 0
    %s69 = sadd.s32 %s68, 1
    %s70 = scalar_select %p67, %s68, %s69
    %p73 = pneg %p67
    %p74 = scmp.eq.s32.totalorder %s20, 3
    %p75 = por %p73, %p74
    %p76 = scmp.ne.s32.totalorder %s68, %s71
    %p77 = scmp.eq.s32.totalorder %s20, 0
    %p78 = por %p76, %p77
    %p79 = scmp.ne.s32.totalorder %s68, %s71
    %p80 = scmp.eq.s32.totalorder %s25, 3
    %p81 = por %p79, %p80
    %p82 = scmp.ne.s32.totalorder %s71, %s72
    %p83 = scmp.eq.s32.totalorder %s25, 0
    %p84 = por %p82, %p83
    %p85 = scmp.ne.s32.totalorder %s71, %s72
    %p86 = scmp.eq.s32.totalorder %s26, 3
    %p87 = por %p85, %p86
    %p89 = scmp.ne.s32.totalorder %s72, %s88
    %p90 = scmp.eq.s32.totalorder %s26, 0
    %p91 = por %p89, %p90
    %s92 = ssub.s32 %s28, %s35
    %p93 = scmp.eq.s32.totalorder %s92, 0
    %s95 = sadd.s32 %s94, 1
    %s96 = scalar_select %p93, %s94, %s95
    %p99 = pneg %p93
    %p100 = scmp.eq.s32.totalorder %s20, 3
    %p101 = por %p99, %p100
    %p102 = scmp.ne.s32.totalorder %s94, %s97
    %p103 = scmp.eq.s32.totalorder %s20, 0
    %p104 = por %p102, %p103
    %p105 = scmp.ne.s32.totalorder %s94, %s97
    %p106 = scmp.eq.s32.totalorder %s25, 3
    %p107 = por %p105, %p106
    %p108 = scmp.ne.s32.totalorder %s97, %s98
    %p109 = scmp.eq.s32.totalorder %s25, 0
    %p110 = por %p108, %p109
    %p111 = scmp.ne.s32.totalorder %s97, %s98
    %p112 = scmp.eq.s32.totalorder %s26, 3
    %p113 = por %p111, %p112
    %p115 = scmp.ne.s32.totalorder %s98, %s114
    %p116 = scmp.eq.s32.totalorder %s26, 0
    %p117 = por %p115, %p116
    %s118 = ssub.s32 %s28, %s35
    %p119 = scmp.eq.s32.totalorder %s118, 0
    %s121 = sadd.s32 %s120, 1
    %s122 = scalar_select %p119, %s120, %s121
    %p125 = pneg %p119
    %p126 = scmp.eq.s32.totalorder %s20, 3
    %p127 = por %p125, %p126
    %p128 = scmp.ne.s32.totalorder %s120, %s123
    %p129 = scmp.eq.s32.totalorder %s20, 0
    %p130 = por %p128, %p129
    %p131 = scmp.ne.s32.totalorder %s120, %s123
    %p132 = scmp.eq.s32.totalorder %s25, 3
    %p133 = por %p131, %p132
    %p134 = scmp.ne.s32.totalorder %s123, %s124
    %p135 = scmp.eq.s32.totalorder %s25, 0
    %p136 = por %p134, %p135
    %p137 = scmp.ne.s32.totalorder %s123, %s124
    %p138 = scmp.eq.s32.totalorder %s26, 3
    %p139 = por %p137, %p138
    %p141 = scmp.ne.s32.totalorder %s124, %s140
    %p142 = scmp.eq.s32.totalorder %s26, 0
    %p143 = por %p141, %p142
    %s144 = ssub.s32 %s28, %s35
    %p145 = scmp.eq.s32.totalorder %s144, 0
    %s147 = sadd.s32 %s146, 1
    %s148 = scalar_select %p145, %s146, %s147
    %p151 = pneg %p145
    %p152 = scmp.eq.s32.totalorder %s20, 3
    %p153 = por %p151, %p152
    %p154 = scmp.ne.s32.totalorder %s146, %s149
    %p155 = scmp.eq.s32.totalorder %s20, 0
    %p156 = por %p154, %p155
    %p157 = scmp.ne.s32.totalorder %s146, %s149
    %p158 = scmp.eq.s32.totalorder %s25, 3
    %p159 = por %p157, %p158
    %p160 = scmp.ne.s32.totalorder %s149, %s150
    %p161 = scmp.eq.s32.totalorder %s25, 0
    %p162 = por %p160, %p161
    %p163 = scmp.ne.s32.totalorder %s149, %s150
    %p164 = scmp.eq.s32.totalorder %s26, 3
    %p165 = por %p163, %p164
    %p167 = scmp.ne.s32.totalorder %s150, %s166
    %p168 = scmp.eq.s32.totalorder %s26, 0
    %p169 = por %p167, %p168
    %s170 = ssub.s32 %s28, %s35
    %p171 = scmp.eq.s32.totalorder %s170, 0
    %s173 = sadd.s32 %s172, 1
    %s174 = scalar_select %p171, %s172, %s173
    %p177 = pneg %p171
    %p178 = scmp.eq.s32.totalorder %s20, 3
    %p179 = por %p177, %p178
    %p180 = scmp.ne.s32.totalorder %s172, %s175
    %p181 = scmp.eq.s32.totalorder %s20, 0
    %p182 = por %p180, %p181
    %p183 = scmp.ne.s32.totalorder %s172, %s175
    %p184 = scmp.eq.s32.totalorder %s25, 3
    %p185 = por %p183, %p184
    %p186 = scmp.ne.s32.totalorder %s175, %s176
    %p187 = scmp.eq.s32.totalorder %s25, 0
    %p188 = por %p186, %p187
    %p189 = scmp.ne.s32.totalorder %s175, %s176
    %p190 = scmp.eq.s32.totalorder %s26, 3
    %p191 = por %p189, %p190
    %p193 = scmp.ne.s32.totalorder %s176, %s192
    %p194 = scmp.eq.s32.totalorder %s26, 0
    %p195 = por %p193, %p194
    %s196 = ssub.s32 %s28, %s35
    %p197 = scmp.eq.s32.totalorder %s196, 0
    %s199 = sadd.s32 %s198, 1
    %s200 = scalar_select %p197, %s198, %s199
    %p203 = pneg %p197
    %p204 = scmp.eq.s32.totalorder %s20, 3
    %p205 = por %p203, %p204
    %p206 = scmp.ne.s32.totalorder %s198, %s201
    %p207 = scmp.eq.s32.totalorder %s20, 0
    %p208 = por %p206, %p207
    %p209 = scmp.ne.s32.totalorder %s198, %s201
    %p210 = scmp.eq.s32.totalorder %s25, 3
    %p211 = por %p209, %p210
    %p212 = scmp.ne.s32.totalorder %s201, %s202
    %p213 = scmp.eq.s32.totalorder %s25, 0
    %p214 = por %p212, %p213
    %p215 = scmp.ne.s32.totalorder %s201, %s202
    %p216 = scmp.eq.s32.totalorder %s26, 3
    %p217 = por %p215, %p216
    %p219 = scmp.ne.s32.totalorder %s202, %s218
    %p220 = scmp.eq.s32.totalorder %s26, 0
    %p221 = por %p219, %p220
    %s222 = ssub.s32 %s28, %s35
    %p223 = scmp.eq.s32.totalorder %s222, 0
    %s225 = sadd.s32 %s224, 1
    %s226 = scalar_select %p223, %s224, %s225
    %p229 = pneg %p223
    %p230 = scmp.eq.s32.totalorder %s20, 3
    %p231 = por %p229, %p230
    %p232 = scmp.ne.s32.totalorder %s224, %s227
    %p233 = scmp.eq.s32.totalorder %s20, 0
    %p234 = por %p232, %p233
    %p235 = scmp.ne.s32.totalorder %s224, %s227
    %p236 = scmp.eq.s32.totalorder %s25, 3
    %p237 = por %p235, %p236
    %p238 = scmp.ne.s32.totalorder %s227, %s228
    %p239 = scmp.eq.s32.totalorder %s25, 0
    %p240 = por %p238, %p239
    %p241 = scmp.ne.s32.totalorder %s227, %s228
    %p242 = scmp.eq.s32.totalorder %s26, 3
    %p243 = por %p241, %p242
    %p245 = scmp.ne.s32.totalorder %s228, %s244
    %p246 = scmp.eq.s32.totalorder %s26, 0
    %p247 = por %p245, %p246
    %s248 = ssub.s32 %s28, %s35
    %p249 = scmp.eq.s32.totalorder %s248, 0
    %s251 = sadd.s32 %s250, 1
    %s252 = scalar_select %p249, %s250, %s251
    %p255 = pneg %p249
    %p256 = scmp.eq.s32.totalorder %s20, 3
    %p257 = por %p255, %p256
    %p258 = scmp.ne.s32.totalorder %s250, %s253
    %p259 = scmp.eq.s32.totalorder %s20, 0
    %p260 = por %p258, %p259
    %p261 = scmp.ne.s32.totalorder %s250, %s253
    %p262 = scmp.eq.s32.totalorder %s25, 3
    %p263 = por %p261, %p262
    %p264 = scmp.ne.s32.totalorder %s253, %s254
    %p265 = scmp.eq.s32.totalorder %s25, 0
    %p266 = por %p264, %p265
    %p267 = scmp.ne.s32.totalorder %s253, %s254
    %p268 = scmp.eq.s32.totalorder %s26, 3
    %p269 = por %p267, %p268
    %p271 = scmp.ne.s32.totalorder %s254, %s270
    %p272 = scmp.eq.s32.totalorder %s26, 0
    %p273 = por %p271, %p272
    %s274 = ssub.s32 %s28, %s35
    %p275 = scmp.eq.s32.totalorder %s274, 0
    %s277 = sadd.s32 %s276, 1
    %s278 = scalar_select %p275, %s276, %s277
    %p281 = pneg %p275
    %p282 = scmp.eq.s32.totalorder %s20, 3
    %p283 = por %p281, %p282
    %p284 = scmp.ne.s32.totalorder %s276, %s279
    %p285 = scmp.eq.s32.totalorder %s20, 0
    %p286 = por %p284, %p285
    %p287 = scmp.ne.s32.totalorder %s276, %s279
    %p288 = scmp.eq.s32.totalorder %s25, 3
    %p289 = por %p287, %p288
    %p290 = scmp.ne.s32.totalorder %s279, %s280
    %p291 = scmp.eq.s32.totalorder %s25, 0
    %p292 = por %p290, %p291
    %p293 = scmp.ne.s32.totalorder %s279, %s280
    %p294 = scmp.eq.s32.totalorder %s26, 3
    %p295 = por %p293, %p294
    %p297 = scmp.ne.s32.totalorder %s280, %s296
    %p298 = scmp.eq.s32.totalorder %s26, 0
    %p299 = por %p297, %p298
    %s300 = ssub.s32 %s28, %s35
    %p301 = scmp.eq.s32.totalorder %s300, 0
    %s303 = sadd.s32 %s302, 1
    %s304 = scalar_select %p301, %s302, %s303
    %p307 = pneg %p301
    %p308 = scmp.eq.s32.totalorder %s20, 3
    %p309 = por %p307, %p308
    %p310 = scmp.ne.s32.totalorder %s302, %s305
    %p311 = scmp.eq.s32.totalorder %s20, 0
    %p312 = por %p310, %p311
    %p313 = scmp.ne.s32.totalorder %s302, %s305
    %p314 = scmp.eq.s32.totalorder %s25, 3
    %p315 = por %p313, %p314
    %p316 = scmp.ne.s32.totalorder %s305, %s306
    %p317 = scmp.eq.s32.totalorder %s25, 0
    %p318 = por %p316, %p317
    %p319 = scmp.ne.s32.totalorder %s305, %s306
    %p320 = scmp.eq.s32.totalorder %s26, 3
    %p321 = por %p319, %p320
    %p323 = scmp.ne.s32.totalorder %s306, %s322
    %p324 = scmp.eq.s32.totalorder %s26, 0
    %p325 = por %p323, %p324
    %s326 = ssub.s32 %s28, %s35
    %p327 = scmp.eq.s32.totalorder %s326, 0
    %s329 = sadd.s32 %s328, 1
    %s330 = scalar_select %p327, %s328, %s329
    %p333 = pneg %p327
    %p334 = scmp.eq.s32.totalorder %s20, 3
    %p335 = por %p333, %p334
    %p336 = scmp.ne.s32.totalorder %s328, %s331
    %p337 = scmp.eq.s32.totalorder %s20, 0
    %p338 = por %p336, %p337
    %p339 = scmp.ne.s32.totalorder %s328, %s331
    %p340 = scmp.eq.s32.totalorder %s25, 3
    %p341 = por %p339, %p340
    %p342 = scmp.ne.s32.totalorder %s331, %s332
    %p343 = scmp.eq.s32.totalorder %s25, 0
    %p344 = por %p342, %p343
    %p345 = scmp.ne.s32.totalorder %s331, %s332
    %p346 = scmp.eq.s32.totalorder %s26, 3
    %p347 = por %p345, %p346
    %p349 = scmp.ne.s32.totalorder %s332, %s348
    %p350 = scmp.eq.s32.totalorder %s26, 0
    %p351 = por %p349, %p350
    %s352 = ssub.s32 %s28, %s35
    %p353 = scmp.eq.s32.totalorder %s352, 0
    %s355 = sadd.s32 %s354, 1
    %s356 = scalar_select %p353, %s354, %s355
    %p359 = pneg %p353
    %p360 = scmp.eq.s32.totalorder %s20, 3
    %p361 = por %p359, %p360
    %p362 = scmp.ne.s32.totalorder %s354, %s357
    %p363 = scmp.eq.s32.totalorder %s20, 0
    %p364 = por %p362, %p363
    %p365 = scmp.ne.s32.totalorder %s354, %s357
    %p366 = scmp.eq.s32.totalorder %s25, 3
    %p367 = por %p365, %p366
    %p368 = scmp.ne.s32.totalorder %s357, %s358
    %p369 = scmp.eq.s32.totalorder %s25, 0
    %p370 = por %p368, %p369
    %p371 = scmp.ne.s32.totalorder %s357, %s358
    %p372 = scmp.eq.s32.totalorder %s26, 3
    %p373 = por %p371, %p372
    %p375 = scmp.ne.s32.totalorder %s358, %s374
    %p376 = scmp.eq.s32.totalorder %s26, 0
    %p377 = por %p375, %p376
    %s378 = ssub.s32 %s28, %s35
    %p379 = scmp.eq.s32.totalorder %s378, 0
    %s381 = sadd.s32 %s380, 1
    %s382 = scalar_select %p379, %s380, %s381
    %p385 = pneg %p379
    %p386 = scmp.eq.s32.totalorder %s20, 3
    %p387 = por %p385, %p386
    %p388 = scmp.ne.s32.totalorder %s380, %s383
    %p389 = scmp.eq.s32.totalorder %s20, 0
    %p390 = por %p388, %p389
    %p391 = scmp.ne.s32.totalorder %s380, %s383
    %p392 = scmp.eq.s32.totalorder %s25, 3
    %p393 = por %p391, %p392
    %p394 = scmp.ne.s32.totalorder %s383, %s384
    %p395 = scmp.eq.s32.totalorder %s25, 0
    %p396 = por %p394, %p395
    %p397 = scmp.ne.s32.totalorder %s383, %s384
    %p398 = scmp.eq.s32.totalorder %s26, 3
    %p399 = por %p397, %p398
    %p401 = scmp.ne.s32.totalorder %s384, %s400
    %p402 = scmp.eq.s32.totalorder %s26, 0
    %p403 = por %p401, %p402
    %s404 = ssub.s32 %s27, %s39
    %p405 = scmp.eq.s32.totalorder %s404, 0
    %s407 = sadd.s32 %s406, 1
    %s408 = scalar_select %p405, %s406, %s407
    %p411 = pneg %p405
    %p412 = scmp.eq.s32.totalorder %s20, 3
    %p413 = por %p411, %p412
    %p414 = scmp.ne.s32.totalorder %s406, %s409
    %p415 = scmp.eq.s32.totalorder %s20, 0
    %p416 = por %p414, %p415
    %p417 = scmp.ne.s32.totalorder %s406, %s409
    %p418 = scmp.eq.s32.totalorder %s25, 3
    %p419 = por %p417, %p418
    %p420 = scmp.ne.s32.totalorder %s409, %s410
    %p421 = scmp.eq.s32.totalorder %s25, 0
    %p422 = por %p420, %p421
    %p423 = scmp.ne.s32.totalorder %s409, %s410
    %p424 = scmp.eq.s32.totalorder %s26, 3
    %p425 = por %p423, %p424
    %p427 = scmp.ne.s32.totalorder %s410, %s426
    %p428 = scmp.eq.s32.totalorder %s26, 0
    %p429 = por %p427, %p428
    %p430 = scmp.le.s32.totalorder 1, %s20
    %p431 = scmp.lt.s32.totalorder %s20, 5
    %p432 = pnand %p430, %p431
    %p433 = pneg %p432
    // Predicated region
    $region9: #{_lambda_.4} parent=5 // pred_check
      _
    $region10: #{_lambda_.4} parent=5 // pred_check_branch
      %435 = sbr.rel (%p432) target = $region12
    $region11: #{_lambda_.4} parent=5 // pred_region
      %s436 = ssub.s32 %s20, 1
    $region12: #{_lambda_.4} parent=5 // pred_fallthru
      _
    %p437 = scmp.lt.s32.totalorder %s20, 4
    // Predicated region
    $region13: #{_lambda_.4} parent=5 // pred_check
      %p438 = pneg %p437
    $region14: #{_lambda_.4} parent=5 // pred_check_branch
      %440 = sbr.rel (%p438) target = $region16
    $region15: #{_lambda_.4} parent=5 // pred_region
      // Predicated region
      $region17: #{_lambda_.4} parent=15 // pred_check
        %p441 = pneg %p52
      $region18: #{_lambda_.4} parent=15 // pred_check_branch
        %443 = sbr.rel (%p441) target = $region20
      $region19: #{_lambda_.4} parent=15 // pred_region
        %p444 = scmp.lt.s32.totalorder %s27, 1
        %s445 = scalar_select %p444, %s27, 1
        %s446 = smul.addr %s445, 4
        %s447 = scalar_lea.vmem %s0, %s446
      $region20: #{_lambda_.4} parent=15 // pred_fallthru
        _
      // Predicated region
      $region21: #{_lambda_.4} parent=15 // pred_check
        %p448 = pneg %p78
      $region22: #{_lambda_.4} parent=15 // pred_check_branch
        %450 = sbr.rel (%p448) target = $region24
      $region23: #{_lambda_.4} parent=15 // pred_region
        %p451 = scmp.lt.s32.totalorder %s27, 1
        %s452 = scalar_select %p451, %s27, 1
        %s453 = scalar_lea.vmem %s1, %s452
      $region24: #{_lambda_.4} parent=15 // pred_fallthru
        _
      // Predicated region
      $region25: #{_lambda_.4} parent=15 // pred_check
        %p454 = pneg %p104
      $region26: #{_lambda_.4} parent=15 // pred_check_branch
        %456 = sbr.rel (%p454) target = $region28
      $region27: #{_lambda_.4} parent=15 // pred_region
        %p457 = scmp.lt.s32.totalorder %s28, 1
        %s458 = scalar_select %p457, %s28, 1
        %s459 = smul.addr %s458, 4
        %s460 = smul.addr %s459, 4
        %s461 = scalar_lea.vmem %s2, %s460
      $region28: #{_lambda_.4} parent=15 // pred_fallthru
        _
      // Predicated region
      $region29: #{_lambda_.4} parent=15 // pred_check
        %p462 = pneg %p130
      $region30: #{_lambda_.4} parent=15 // pred_check_branch
        %464 = sbr.rel (%p462) target = $region32
      $region31: #{_lambda_.4} parent=15 // pred_region
        %p465 = scmp.lt.s32.totalorder %s28, 1
        %s466 = scalar_select %p465, %s28, 1
        %s467 = scalar_lea.vmem %s3, %s466
      $region32: #{_lambda_.4} parent=15 // pred_fallthru
        _
      // Predicated region
      $region33: #{_lambda_.4} parent=15 // pred_check
        %p468 = pneg %p156
      $region34: #{_lambda_.4} parent=15 // pred_check_branch
        %470 = sbr.rel (%p468) target = $region36
      $region35: #{_lambda_.4} parent=15 // pred_region
        %p471 = scmp.lt.s32.totalorder %s28, 1
        %s472 = scalar_select %p471, %s28, 1
        %s473 = smul.addr %s472, 4
        %s474 = smul.addr %s473, 4
        %s475 = scalar_lea.vmem %s4, %s474
      $region36: #{_lambda_.4} parent=15 // pred_fallthru
        _
      // Predicated region
      $region37: #{_lambda_.4} parent=15 // pred_check
        %p476 = pneg %p182
      $region38: #{_lambda_.4} parent=15 // pred_check_branch
        %478 = sbr.rel (%p476) target = $region40
      $region39: #{_lambda_.4} parent=15 // pred_region
        %p479 = scmp.lt.s32.totalorder %s28, 1
        %s480 = scalar_select %p479, %s28, 1
        %s481 = scalar_lea.vmem %s5, %s480
      $region40: #{_lambda_.4} parent=15 // pred_fallthru
        _
      // Predicated region
      $region41: #{_lambda_.4} parent=15 // pred_check
        %p482 = pneg %p208
      $region42: #{_lambda_.4} parent=15 // pred_check_branch
        %484 = sbr.rel (%p482) target = $region44
      $region43: #{_lambda_.4} parent=15 // pred_region
        %p485 = scmp.lt.s32.totalorder %s28, 1
        %s486 = scalar_select %p485, %s28, 1
        %s487 = scalar_lea.vmem %s6, %s486
      $region44: #{_lambda_.4} parent=15 // pred_fallthru
        _
      // Predicated region
      $region45: #{_lambda_.4} parent=15 // pred_check
        %p488 = pneg %p234
      $region46: #{_lambda_.4} parent=15 // pred_check_branch
        %490 = sbr.rel (%p488) target = $region48
      $region47: #{_lambda_.4} parent=15 // pred_region
        %p491 = scmp.lt.s32.totalorder %s28, 1
        %s492 = scalar_select %p491, %s28, 1
        %s493 = scalar_lea.vmem %s7, %s492
      $region48: #{_lambda_.4} parent=15 // pred_fallthru
        _
      // Predicated region
      $region49: #{_lambda_.4} parent=15 // pred_check
        %p494 = pneg %p260
      $region50: #{_lambda_.4} parent=15 // pred_check_branch
        %496 = sbr.rel (%p494) target = $region52
      $region51: #{_lambda_.4} parent=15 // pred_region
        %p497 = scmp.lt.s32.totalorder %s28, 1
        %s498 = scalar_select %p497, %s28, 1
        %s499 = smul.addr %s498, 4
        %s500 = smul.addr %s499, 4
        %s501 = scalar_lea.vmem %s8, %s500
      $region52: #{_lambda_.4} parent=15 // pred_fallthru
        _
      // Predicated region
      $region53: #{_lambda_.4} parent=15 // pred_check
        %p502 = pneg %p286
      $region54: #{_lambda_.4} parent=15 // pred_check_branch
        %504 = sbr.rel (%p502) target = $region56
      $region55: #{_lambda_.4} parent=15 // pred_region
        %p505 = scmp.lt.s32.totalorder %s28, 1
        %s506 = scalar_select %p505, %s28, 1
        %s507 = scalar_lea.vmem %s9, %s506
      $region56: #{_lambda_.4} parent=15 // pred_fallthru
        _
      // Predicated region
      $region57: #{_lambda_.4} parent=15 // pred_check
        %p508 = pneg %p312
      $region58: #{_lambda_.4} parent=15 // pred_check_branch
        %510 = sbr.rel (%p508) target = $region60
      $region59: #{_lambda_.4} parent=15 // pred_region
        %p511 = scmp.lt.s32.totalorder %s28, 1
        %s512 = scalar_select %p511, %s28, 1
        %s513 = smul.addr %s512, 16
        %s514 = smul.addr %s513, 4
        %s515 = scalar_lea.vmem %s10, %s514
      $region60: #{_lambda_.4} parent=15 // pred_fallthru
        _
      // Predicated region
      $region61: #{_lambda_.4} parent=15 // pred_check
        %p516 = pneg %p338
      $region62: #{_lambda_.4} parent=15 // pred_check_branch
        %518 = sbr.rel (%p516) target = $region64
      $region63: #{_lambda_.4} parent=15 // pred_region
        %p519 = scmp.lt.s32.totalorder %s28, 1
        %s520 = scalar_select %p519, %s28, 1
        %s521 = scalar_lea.vmem %s11, %s520
      $region64: #{_lambda_.4} parent=15 // pred_fallthru
        _
      // Predicated region
      $region65: #{_lambda_.4} parent=15 // pred_check
        %p522 = pneg %p364
      $region66: #{_lambda_.4} parent=15 // pred_check_branch
        %524 = sbr.rel (%p522) target = $region68
      $region67: #{_lambda_.4} parent=15 // pred_region
        %p525 = scmp.lt.s32.totalorder %s28, 1
        %s526 = scalar_select %p525, %s28, 1
        %s527 = scalar_lea.vmem %s12, %s526
      $region68: #{_lambda_.4} parent=15 // pred_fallthru
        _
      // Predicated region
      $region69: #{_lambda_.4} parent=15 // pred_check
        %p528 = pneg %p390
      $region70: #{_lambda_.4} parent=15 // pred_check_branch
        %530 = sbr.rel (%p528) target = $region72
      $region71: #{_lambda_.4} parent=15 // pred_region
        %p531 = scmp.lt.s32.totalorder %s28, 1
        %s532 = scalar_select %p531, %s28, 1
        %s533 = scalar_lea.vmem %s13, %s532
      $region72: #{_lambda_.4} parent=15 // pred_fallthru
        _
    $region16: #{_lambda_.4} parent=5 // pred_fallthru
      _
    %p534 = scmp.le.s32.totalorder 1, %s20
    %p535 = scmp.lt.s32.totalorder %s20, 5
    %p536 = pnand %p534, %p535
    %p537 = pneg %p536
    // Predicated region
    $region73: #{_lambda_.4} parent=5 // pred_check
      _
    $region74: #{_lambda_.4} parent=5 // pred_check_branch
      %539 = sbr.rel (%p536) target = $region76
    $region75: #{_lambda_.4} parent=5 // pred_region
      %s540 = ssub.s32 %s20, 1
      %p541 = scmp.lt.s32.totalorder %s29, 1
      %s542 = scalar_select %p541, %s29, 1
      %s543 = smul.addr %s542, 4
      %s544 = scalar_lea.vmem %s0, %s543
      %p545 = pneg %p58
      %p546 = pneg %p55
      %p547 = scmp.lt.s32.totalorder %s29, 1
      %s548 = scalar_select %p547, %s29, 1
      %s549 = scalar_lea.vmem %s1, %s548
      %p550 = pneg %p84
      %p551 = pneg %p81
      %p552 = scmp.lt.s32.totalorder %s30, 1
      %s553 = scalar_select %p552, %s30, 1
      %s554 = smul.addr %s553, 4
      %s555 = smul.addr %s554, 4
      %s556 = scalar_lea.vmem %s2, %s555
      %p557 = pneg %p110
      %p558 = pneg %p107
      %p559 = scmp.lt.s32.totalorder %s30, 1
      %s560 = scalar_select %p559, %s30, 1
      %s561 = scalar_lea.vmem %s3, %s560
      %p562 = pneg %p136
      %p563 = pneg %p133
      %p564 = scmp.lt.s32.totalorder %s30, 1
      %s565 = scalar_select %p564, %s30, 1
      %s566 = smul.addr %s565, 4
      %s567 = smul.addr %s566, 4
      %s568 = scalar_lea.vmem %s4, %s567
      %p569 = pneg %p162
      %p570 = pneg %p159
      %p571 = scmp.lt.s32.totalorder %s30, 1
      %s572 = scalar_select %p571, %s30, 1
      %s573 = scalar_lea.vmem %s5, %s572
      %p574 = pneg %p188
      %p575 = pneg %p185
      %p576 = scmp.lt.s32.totalorder %s30, 1
      %s577 = scalar_select %p576, %s30, 1
      %s578 = scalar_lea.vmem %s6, %s577
      %p579 = pneg %p214
      %p580 = pneg %p211
      %p581 = scmp.lt.s32.totalorder %s30, 1
      %s582 = scalar_select %p581, %s30, 1
      %s583 = scalar_lea.vmem %s7, %s582
      %p584 = pneg %p240
      %p585 = pneg %p237
      %p586 = scmp.lt.s32.totalorder %s30, 1
      %s587 = scalar_select %p586, %s30, 1
      %s588 = smul.addr %s587, 4
      %s589 = smul.addr %s588, 4
      %s590 = scalar_lea.vmem %s8, %s589
      %p591 = pneg %p266
      %p592 = pneg %p263
      %p593 = scmp.lt.s32.totalorder %s30, 1
      %s594 = scalar_select %p593, %s30, 1
      %s595 = scalar_lea.vmem %s9, %s594
      %p596 = pneg %p292
      %p597 = pneg %p289
      %p598 = scmp.lt.s32.totalorder %s30, 1
      %s599 = scalar_select %p598, %s30, 1
      %s600 = smul.addr %s599, 16
      %s601 = smul.addr %s600, 4
      %s602 = scalar_lea.vmem %s10, %s601
      %p603 = pneg %p318
      %p604 = pneg %p315
      %p605 = scmp.lt.s32.totalorder %s30, 1
      %s606 = scalar_select %p605, %s30, 1
      %s607 = scalar_lea.vmem %s11, %s606
      %p608 = pneg %p344
      %p609 = pneg %p341
      %p610 = scmp.lt.s32.totalorder %s30, 1
      %s611 = scalar_select %p610, %s30, 1
      %s612 = scalar_lea.vmem %s12, %s611
      %p613 = pneg %p370
      %p614 = pneg %p367
      %p615 = scmp.lt.s32.totalorder %s30, 1
      %s616 = scalar_select %p615, %s30, 1
      %s617 = scalar_lea.vmem %s13, %s616
      %p618 = pneg %p396
      %p619 = pneg %p393
      %p620 = pneg %p422
      %p621 = pneg %p419
      %p622 = scmp.lt.s32.totalorder %s29, 1
      %s623 = scalar_select %p622, %s29, 1
      %s624 = smul.addr %s623, 4
      %s625 = scalar_lea.vmem %s14, %s624
      %p626 = scmp.lt.s32.totalorder %s29, 1
      %s627 = scalar_select %p626, %s29, 1
      %s628 = smul.addr %s627, 4
      %s629 = scalar_lea.vmem %s0, %s628
      %p630 = scmp.lt.s32.totalorder %s29, 1
      %s631 = scalar_select %p630, %s29, 1
      %s632 = scalar_lea.vmem %s1, %s631
      %p633 = scmp.lt.s32.totalorder %s30, 1
      %s634 = scalar_select %p633, %s30, 1
      %s635 = smul.addr %s634, 4
      %s636 = smul.addr %s635, 4
      %s637 = scalar_lea.vmem %s2, %s636
      %p638 = scmp.lt.s32.totalorder %s30, 1
      %s639 = scalar_select %p638, %s30, 1
      %s640 = scalar_lea.vmem %s3, %s639
      %p641 = scmp.lt.s32.totalorder %s30, 1
      %s642 = scalar_select %p641, %s30, 1
      %s643 = smul.addr %s642, 4
      %s644 = smul.addr %s643, 4
      %s645 = scalar_lea.vmem %s4, %s644
      %p646 = scmp.lt.s32.totalorder %s30, 1
      %s647 = scalar_select %p646, %s30, 1
      %s648 = scalar_lea.vmem %s5, %s647
      %p649 = scmp.lt.s32.totalorder %s30, 1
      %s650 = scalar_select %p649, %s30, 1
      %s651 = scalar_lea.vmem %s6, %s650
      %p652 = scmp.lt.s32.totalorder %s30, 1
      %s653 = scalar_select %p652, %s30, 1
      %s654 = scalar_lea.vmem %s7, %s653
      %p655 = scmp.lt.s32.totalorder %s30, 1
      %s656 = scalar_select %p655, %s30, 1
      %s657 = smul.addr %s656, 4
      %s658 = smul.addr %s657, 4
      %s659 = scalar_lea.vmem %s8, %s658
      %p660 = scmp.lt.s32.totalorder %s30, 1
      %s661 = scalar_select %p660, %s30, 1
      %s662 = scalar_lea.vmem %s9, %s661
      %p663 = scmp.lt.s32.totalorder %s30, 1
      %s664 = scalar_select %p663, %s30, 1
      %s665 = smul.addr %s664, 16
      %s666 = smul.addr %s665, 4
      %s667 = scalar_lea.vmem %s10, %s666
      %p668 = scmp.lt.s32.totalorder %s30, 1
      %s669 = scalar_select %p668, %s30, 1
      %s670 = scalar_lea.vmem %s11, %s669
      %p671 = scmp.lt.s32.totalorder %s30, 1
      %s672 = scalar_select %p671, %s30, 1
      %s673 = scalar_lea.vmem %s12, %s672
      %p674 = scmp.lt.s32.totalorder %s30, 1
      %s675 = scalar_select %p674, %s30, 1
      %s676 = scalar_lea.vmem %s13, %s675
      %p677 = scmp.lt.s32.totalorder %s29, 1
      %s678 = scalar_select %p677, %s29, 1
      %s679 = smul.addr %s678, 4
      %s680 = scalar_lea.vmem %s14, %s679
      %p682 = scmp.eq.s32.totalorder %s30, 0
      // Predicated region
      $region77: #{_lambda_.4} parent=75 // pred_check
        %p683 = pneg %p682
      $region78: #{_lambda_.4} parent=75 // pred_check_branch
        %685 = sbr.rel (%p683) target = $region80
      $region79: #{_lambda_.4} parent=75 // pred_region
        %v686 = vld [vmem:[%s629] sm:$0xf]
        %v687 = vunpack.c.l.bf16 %v686
        %vm688 = vcmask 261120
        %689 = vst.msk [vmem:[#allocation2] sm:$0xff] %vm688, %v687
      $region80: #{_lambda_.4} parent=75 // pred_fallthru
        _
      %v690 = vld [vmem:[#allocation2] sm:$0xff]
      %v691 = vpack.c.bf16 %v690, %v690
      %v692 = vld [vmem:[%s632] sm:$0x1]
      %v693 = vld [vmem:[%s637] sm:$0xf]
      %v694 = vld [vmem:[%s637 + $0x4] sm:$0xf]
      %v695 = vld [vmem:[%s637 + $0x8] sm:$0xf]
      %v696 = vld [vmem:[%s637 + $0xc] sm:$0xf]
      %v697 = vld [vmem:[%s640] sm:$0x1]
      %v699 = vlaneseq
      %v700 = vshrl.u32 %v699, 7
      %v701 = vsub.s32 0, %v700
      %v702 = vrot.slane %v697, %v701
      %v708 = vunpack.c.l.b16 %v693
      %v709 = vunpack.c.l.b16 %v694
      %v710 = vunpack.c.l.b16 %v695
      %v711 = vunpack.c.l.b16 %v696
      %v712 = vpack.c.b16 %v709, %v708
      %v713 = vpack.c.b16 %v711, %v710
      %vm716 = vcmask 261120
      %v718 = vsel %vm716, %v691, 0
      %720 = vmatprep.subr.bf16.mxu0 0
      %721 = vmatpush1.bf16.msra.mxu0 0
      %722 = vmatprep.subr.bf16.mxu0 0
      %723 = vmatpush1.bf16.msra.mxu0 0
      %724 = vmatprep.subr.bf16.mxu0 0
      %725 = vmatpush1.bf16.msra.mxu0 0
      %726 = vmatprep.subr.bf16.mxu0 0
      %727 = vmatpush1.bf16.msra.mxu0 0
      %728 = vmatprep.subr.bf16.mxu0 0
      %729 = vmatpush1.bf16.msra.mxu0 0
      %730 = vmatprep.subr.bf16.mxu0 0
      %731 = vmatpush1.bf16.msra.mxu0 0
      %732 = vmatprep.subr.bf16.mxu0 0
      %733 = vmatpush1.bf16.msra.mxu0 %v713
      %734 = vmatprep.subr.bf16.mxu0 0
      %735 = vmatpush1.bf16.msra.mxu0 %v712
      %736 = vmatprep.subr.bf16.mxu0 0
      %737 = vmatpush2.bf16.msra.mxu0 0
      %738 = vmatprep.subr.bf16.mxu0 0
      %739 = vmatpush2.bf16.msra.mxu0 0
      %740 = vmatprep.subr.bf16.mxu0 0
      %741 = vmatpush2.bf16.msra.mxu0 0
      %742 = vmatprep.subr.bf16.mxu0 0
      %743 = vmatpush2.bf16.msra.mxu0 0
      %744 = vmatprep.subr.bf16.mxu0 0
      %745 = vmatpush2.bf16.msra.mxu0 0
      %746 = vmatprep.subr.bf16.mxu0 0
      %747 = vmatpush2.bf16.msra.mxu0 0
      %748 = vmatprep.subr.bf16.mxu0 0
      %749 = vmatpush2.bf16.msra.mxu0 0
      %750 = vmatprep.subr.bf16.mxu0 0
      %751 = vmatpush2.bf16.msra.mxu0 0
      %752 = vmatprep.mubr.bf16.mxu0 0
      %753 = vmatmul.mubr.bf16.gmra.mxu0 %v718
      %v754 = vpop.f32.mrf.mxu0
      %v755 = vadd.f32 %v702, %v754
      %v756 = vpop.f32.mrf.mxu0
      %v757 = vpop.f32.mrf.mxu0
      %v758 = vpop.f32.mrf.mxu0
      %759 = vdwg.mxu0
      %761 = vrot.lane.b32.xlu0 %v755, 112
      %v762 = vpop.permute.xlu0 %761
      %v764 = vpack.c.bf16 %v755, %v755
      %v765 = vpack.c.bf16 %v762, %v762
      %v767 = vlaneseq
      %v768 = vshrl.u32 %v767, 7
      %v769 = vsub.s32 0, %v768
      %v770 = vrot.slane %v692, %v769
      %773 = vrot.lane.b32.xlu0 %v764, 96
      %v774 = vpop.permute.xlu0 %773
      %vm775 = vcmask 130048
      %v777 = vsel %vm775, %v764, 0
      %v780 = vsel %vm775, %v774, 0
      %782 = vmatprep.subr.bf16.mxu0 0
      %783 = vmatpush1.bf16.xpose.msra.mxu0 0
      %784 = vmatprep.subr.bf16.mxu0 0
      %785 = vmatpush1.bf16.xpose.msra.mxu0 0
      %786 = vmatprep.subr.bf16.mxu0 0
      %787 = vmatpush1.bf16.xpose.msra.mxu0 0
      %788 = vmatprep.subr.bf16.mxu0 0
      %789 = vmatpush1.bf16.xpose.msra.mxu0 0
      %790 = vmatprep.subr.bf16.mxu0 0
      %791 = vmatpush1.bf16.xpose.msra.mxu0 0
      %792 = vmatprep.subr.bf16.mxu0 0
      %793 = vmatpush1.bf16.xpose.msra.mxu0 0
      %794 = vmatprep.subr.bf16.mxu0 0
      %795 = vmatpush1.bf16.xpose.msra.mxu0 0
      %796 = vmatprep.subr.bf16.mxu0 0
      %797 = vmatpush1.bf16.xpose.msra.mxu0 %v780
      %798 = vmatprep.subr.bf16.mxu0 0
      %799 = vmatpush2.bf16.xpose.msra.mxu0 0
      %800 = vmatprep.subr.bf16.mxu0 0
      %801 = vmatpush2.bf16.xpose.msra.mxu0 0
      %802 = vmatprep.subr.bf16.mxu0 0
      %803 = vmatpush2.bf16.xpose.msra.mxu0 0
      %804 = vmatprep.subr.bf16.mxu0 0
      %805 = vmatpush2.bf16.xpose.msra.mxu0 0
      %806 = vmatprep.subr.bf16.mxu0 0
      %807 = vmatpush2.bf16.xpose.msra.mxu0 0
      %808 = vmatprep.subr.bf16.mxu0 0
      %809 = vmatpush2.bf16.xpose.msra.mxu0 0
      %810 = vmatprep.subr.bf16.mxu0 0
      %811 = vmatpush2.bf16.xpose.msra.mxu0 0
      %812 = vmatprep.subr.bf16.mxu0 0
      %813 = vmatpush2.bf16.xpose.msra.mxu0 0
      %814 = vmatprep.mubr.bf16.mxu0 0
      %815 = vmatmul.mubr.bf16.gmra.mxu0 %v777
      %v816 = vpop.f32.mrf.mxu0
      %v817 = vadd.f32 %v770, %v816
      %v818 = vpop.f32.mrf.mxu0
      %v819 = vpop.f32.mrf.mxu0
      %v820 = vpop.f32.mrf.mxu0
      %821 = vdwg.mxu0
      %823 = vrot.lane.b32.xlu0 %v765, 96
      %v824 = vpop.permute.xlu0 %823
      %v826 = vsel %vm775, %v765, 0
      %v829 = vsel %vm775, %v824, 0
      %831 = vmatprep.subr.bf16.mxu0 0
      %832 = vmatpush1.bf16.xpose.msra.mxu0 0
      %833 = vmatprep.subr.bf16.mxu0 0
      %834 = vmatpush1.bf16.xpose.msra.mxu0 0
      %835 = vmatprep.subr.bf16.mxu0 0
      %836 = vmatpush1.bf16.xpose.msra.mxu0 0
      %837 = vmatprep.subr.bf16.mxu0 0
      %838 = vmatpush1.bf16.xpose.msra.mxu0 0
      %839 = vmatprep.subr.bf16.mxu0 0
      %840 = vmatpush1.bf16.xpose.msra.mxu0 0
      %841 = vmatprep.subr.bf16.mxu0 0
      %842 = vmatpush1.bf16.xpose.msra.mxu0 0
      %843 = vmatprep.subr.bf16.mxu0 0
      %844 = vmatpush1.bf16.xpose.msra.mxu0 0
      %845 = vmatprep.subr.bf16.mxu0 0
      %846 = vmatpush1.bf16.xpose.msra.mxu0 %v829
      %847 = vmatprep.subr.bf16.mxu0 0
      %848 = vmatpush2.bf16.xpose.msra.mxu0 0
      %849 = vmatprep.subr.bf16.mxu0 0
      %850 = vmatpush2.bf16.xpose.msra.mxu0 0
      %851 = vmatprep.subr.bf16.mxu0 0
      %852 = vmatpush2.bf16.xpose.msra.mxu0 0
      %853 = vmatprep.subr.bf16.mxu0 0
      %854 = vmatpush2.bf16.xpose.msra.mxu0 0
      %855 = vmatprep.subr.bf16.mxu0 0
      %856 = vmatpush2.bf16.xpose.msra.mxu0 0
      %857 = vmatprep.subr.bf16.mxu0 0
      %858 = vmatpush2.bf16.xpose.msra.mxu0 0
      %859 = vmatprep.subr.bf16.mxu0 0
      %860 = vmatpush2.bf16.xpose.msra.mxu0 0
      %861 = vmatprep.subr.bf16.mxu0 0
      %862 = vmatpush2.bf16.xpose.msra.mxu0 0
      %863 = vmatprep.mubr.bf16.mxu0 0
      %864 = vmatmul.mubr.bf16.gmra.mxu0 %v826
      %v865 = vpop.f32.mrf.mxu0
      %v866 = vadd.f32 %v770, %v865
      %v867 = vpop.f32.mrf.mxu0
      %v868 = vpop.f32.mrf.mxu0
      %v869 = vpop.f32.mrf.mxu0
      %870 = vdwg.mxu0
      %vm871 = vcmask 64512
      %v872 = vsel %vm871, %v817, -inf
      %873 = vmax.xlane.f32.xlu0 %v872
      %v874 = vpop.xlane.xlu0 %873
      %v875 = vsel %vm871, %v866, -inf
      %876 = vmax.xlane.f32.xlu0 %v875
      %v877 = vpop.xlane.xlu0 %876
      %v878 = vsub.f32 %v817, %v874
      %v879 = vsub.f32 %v866, %v877
      %v880 = vmul.f32 %v878, 1.442695
      %v881 = vpow.pop %v880
      %v882 = vmul.f32 %v879, 1.442695
      %v883 = vpow.pop %v882
      %v884 = vsel %vm871, %v881, 0.0
      %885 = vadd.xlane.f32.xlu0 %v884
      %v886 = vpop.xlane.xlu0 %885
      %v887 = vsel %vm871, %v883, 0.0
      %888 = vadd.xlane.f32.xlu0 %v887
      %v889 = vpop.xlane.xlu0 %888
      %v890 = vrcp.pop %v886
      %v891 = vrcp.pop %v889
      %v892 = vmul.f32 %v881, %v890
      %v893 = vmul.f32 %v883, %v891
      %v894 = vpack.c.bf16 %v892, %v892
      %v895 = vpack.c.bf16 %v893, %v893
      %896 = vrot.lane.b32.xlu0 %v764, 64
      %v897 = vpop.permute.xlu0 %896
      %v899 = vsel %vm871, %v894, 0
      %vm901 = vcmask 1043456
      %v903 = vsel %vm901, %v897, 0
      %905 = vmatprep.subr.bf16.mxu0 0
      %906 = vmatpush1.bf16.msra.mxu0 0
      %907 = vmatprep.subr.bf16.mxu0 0
      %908 = vmatpush1.bf16.msra.mxu0 0
      %909 = vmatprep.subr.bf16.mxu0 0
      %910 = vmatpush1.bf16.msra.mxu0 0
      %911 = vmatprep.subr.bf16.mxu0 0
      %912 = vmatpush1.bf16.msra.mxu0 0
      %913 = vmatprep.subr.bf16.mxu0 0
      %914 = vmatpush1.bf16.msra.mxu0 0
      %915 = vmatprep.subr.bf16.mxu0 0
      %916 = vmatpush1.bf16.msra.mxu0 0
      %917 = vmatprep.subr.bf16.mxu0 0
      %918 = vmatpush1.bf16.msra.mxu0 0
      %919 = vmatprep.subr.bf16.mxu0 0
      %920 = vmatpush1.bf16.msra.mxu0 %v903
      %921 = vmatprep.subr.bf16.mxu0 0
      %922 = vmatpush2.bf16.msra.mxu0 0
      %923 = vmatprep.subr.bf16.mxu0 0
      %924 = vmatpush2.bf16.msra.mxu0 0
      %925 = vmatprep.subr.bf16.mxu0 0
      %926 = vmatpush2.bf16.msra.mxu0 0
      %927 = vmatprep.subr.bf16.mxu0 0
      %928 = vmatpush2.bf16.msra.mxu0 0
      %929 = vmatprep.subr.bf16.mxu0 0
      %930 = vmatpush2.bf16.msra.mxu0 0
      %931 = vmatprep.subr.bf16.mxu0 0
      %932 = vmatpush2.bf16.msra.mxu0 0
      %933 = vmatprep.subr.bf16.mxu0 0
      %934 = vmatpush2.bf16.msra.mxu0 0
      %935 = vmatprep.subr.bf16.mxu0 0
      %936 = vmatpush2.bf16.msra.mxu0 0
      %937 = vmatprep.mubr.bf16.mxu0 0
      %938 = vmatmul.mubr.bf16.gmra.mxu0 %v899
      %v939 = vpop.f32.mrf.mxu0
      %v940 = vadd.f32 0.0, %v939
      %v941 = vpop.f32.mrf.mxu0
      %v942 = vpop.f32.mrf.mxu0
      %v943 = vpop.f32.mrf.mxu0
      %944 = vdwg.mxu0
      %945 = vrot.lane.b32.xlu0 %v765, 64
      %v946 = vpop.permute.xlu0 %945
      %v948 = vsel %vm871, %v895, 0
      %v951 = vsel %vm901, %v946, 0
      %953 = vmatprep.subr.bf16.mxu0 0
      %954 = vmatpush1.bf16.msra.mxu0 0
      %955 = vmatprep.subr.bf16.mxu0 0
      %956 = vmatpush1.bf16.msra.mxu0 0
      %957 = vmatprep.subr.bf16.mxu0 0
      %958 = vmatpush1.bf16.msra.mxu0 0
      %959 = vmatprep.subr.bf16.mxu0 0
      %960 = vmatpush1.bf16.msra.mxu0 0
      %961 = vmatprep.subr.bf16.mxu0 0
      %962 = vmatpush1.bf16.msra.mxu0 0
      %963 = vmatprep.subr.bf16.mxu0 0
      %964 = vmatpush1.bf16.msra.mxu0 0
      %965 = vmatprep.subr.bf16.mxu0 0
      %966 = vmatpush1.bf16.msra.mxu0 0
      %967 = vmatprep.subr.bf16.mxu0 0
      %968 = vmatpush1.bf16.msra.mxu0 %v951
      %969 = vmatprep.subr.bf16.mxu0 0
      %970 = vmatpush2.bf16.msra.mxu0 0
      %971 = vmatprep.subr.bf16.mxu0 0
      %972 = vmatpush2.bf16.msra.mxu0 0
      %973 = vmatprep.subr.bf16.mxu0 0
      %974 = vmatpush2.bf16.msra.mxu0 0
      %975 = vmatprep.subr.bf16.mxu0 0
      %976 = vmatpush2.bf16.msra.mxu0 0
      %977 = vmatprep.subr.bf16.mxu0 0
      %978 = vmatpush2.bf16.msra.mxu0 0
      %979 = vmatprep.subr.bf16.mxu0 0
      %980 = vmatpush2.bf16.msra.mxu0 0
      %981 = vmatprep.subr.bf16.mxu0 0
      %982 = vmatpush2.bf16.msra.mxu0 0
      %983 = vmatprep.subr.bf16.mxu0 0
      %984 = vmatpush2.bf16.msra.mxu0 0
      %985 = vmatprep.mubr.bf16.mxu0 0
      %986 = vmatmul.mubr.bf16.gmra.mxu0 %v948
      %v987 = vpop.f32.mrf.mxu0
      %v988 = vadd.f32 0.0, %v987
      %v989 = vpop.f32.mrf.mxu0
      %v990 = vpop.f32.mrf.mxu0
      %v991 = vpop.f32.mrf.mxu0
      %992 = vdwg.mxu0
      %994 = vrot.lane.b32.xlu0 %v988, 16
      %v995 = vpop.permute.xlu0 %994
      %v997 = vsel %vm775, %v940, %v995
      %v998 = vpack.c.bf16 %v997, %v997
      %v999 = vld [vmem:[%s645] sm:$0xf]
      %v1000 = vld [vmem:[%s645 + $0x4] sm:$0xf]
      %v1001 = vld [vmem:[%s645 + $0x8] sm:$0xf]
      %v1002 = vld [vmem:[%s645 + $0xc] sm:$0xf]
      %v1003 = vld [vmem:[%s648] sm:$0x1]
      %v1005 = vlaneseq
      %v1006 = vshrl.u32 %v1005, 7
      %v1007 = vsub.s32 0, %v1006
      %v1008 = vrot.slane %v1003, %v1007
      %v1014 = vunpack.c.l.b16 %v999
      %v1015 = vunpack.c.l.b16 %v1000
      %v1016 = vunpack.c.l.b16 %v1001
      %v1017 = vunpack.c.l.b16 %v1002
      %v1018 = vpack.c.b16 %v1015, %v1014
      %v1019 = vpack.c.b16 %v1017, %v1016
      %v1023 = vsel %vm716, %v998, 0
      %1025 = vmatprep.subr.bf16.mxu0 0
      %1026 = vmatpush1.bf16.msra.mxu0 0
      %1027 = vmatprep.subr.bf16.mxu0 0
      %1028 = vmatpush1.bf16.msra.mxu0 0
      %1029 = vmatprep.subr.bf16.mxu0 0
      %1030 = vmatpush1.bf16.msra.mxu0 0
      %1031 = vmatprep.subr.bf16.mxu0 0
      %1032 = vmatpush1.bf16.msra.mxu0 0
      %1033 = vmatprep.subr.bf16.mxu0 0
      %1034 = vmatpush1.bf16.msra.mxu0 0
      %1035 = vmatprep.subr.bf16.mxu0 0
      %1036 = vmatpush1.bf16.msra.mxu0 0
      %1037 = vmatprep.subr.bf16.mxu0 0
      %1038 = vmatpush1.bf16.msra.mxu0 %v1019
      %1039 = vmatprep.subr.bf16.mxu0 0
      %1040 = vmatpush1.bf16.msra.mxu0 %v1018
      %1041 = vmatprep.subr.bf16.mxu0 0
      %1042 = vmatpush2.bf16.msra.mxu0 0
      %1043 = vmatprep.subr.bf16.mxu0 0
      %1044 = vmatpush2.bf16.msra.mxu0 0
      %1045 = vmatprep.subr.bf16.mxu0 0
      %1046 = vmatpush2.bf16.msra.mxu0 0
      %1047 = vmatprep.subr.bf16.mxu0 0
      %1048 = vmatpush2.bf16.msra.mxu0 0
      %1049 = vmatprep.subr.bf16.mxu0 0
      %1050 = vmatpush2.bf16.msra.mxu0 0
      %1051 = vmatprep.subr.bf16.mxu0 0
      %1052 = vmatpush2.bf16.msra.mxu0 0
      %1053 = vmatprep.subr.bf16.mxu0 0
      %1054 = vmatpush2.bf16.msra.mxu0 0
      %1055 = vmatprep.subr.bf16.mxu0 0
      %1056 = vmatpush2.bf16.msra.mxu0 0
      %1057 = vmatprep.mubr.bf16.mxu0 0
      %1058 = vmatmul.mubr.bf16.gmra.mxu0 %v1023
      %v1059 = vpop.f32.mrf.mxu0
      %v1060 = vadd.f32 %v1008, %v1059
      %v1061 = vpop.f32.mrf.mxu0
      %v1062 = vpop.f32.mrf.mxu0
      %v1063 = vpop.f32.mrf.mxu0
      %1064 = vdwg.mxu0
      %v1065 = vadd.f32 %v1060, %v690
      %v1066 = vld [vmem:[%s651] sm:$0x1]
      %v1067 = vld [vmem:[%s654] sm:$0x1]
      %v1068 = vsel %vm716, %v1065, 0.0
      %1069 = vadd.xlane.f32.xlu0 %v1068
      %v1070 = vpop.xlane.xlu0 %1069
      %v1071 = vrcp.pop 32.0
      %v1072 = vmul.f32 %v1070, %v1071
      %v1073 = vsub.f32 %v1065, %v1072
      %v1074 = vmul.f32 %v1073, %v1073
      %v1075 = vsel %vm716, %v1074, 0.0
      %1076 = vadd.xlane.f32.xlu0 %v1075
      %v1077 = vpop.xlane.xlu0 %1076
      %v1078 = vmul.f32 %v1077, %v1071
      %v1079 = vadd.f32 %v1078, 1e-12
      %v1080 = vrsqrt.pop %v1079
      %v1081 = vmul.f32 %v1073, %v1080
      %v1083 = vlaneseq
      %v1084 = vshrl.u32 %v1083, 7
      %v1085 = vsub.s32 0, %v1084
      %v1086 = vrot.slane %v1066, %v1085
      %v1088 = vmul.f32 %v1081, %v1086
      %v1090 = vlaneseq
      %v1091 = vshrl.u32 %v1090, 7
      %v1092 = vsub.s32 0, %v1091
      %v1093 = vrot.slane %v1067, %v1092
      %v1095 = vadd.f32 %v1088, %v1093
      %v1096 = vpack.c.bf16 %v1095, %v1095
      %v1097 = vld [vmem:[%s659] sm:$0xf]
      %v1098 = vld [vmem:[%s659 + $0x4] sm:$0xf]
      %v1099 = vld [vmem:[%s659 + $0x8] sm:$0xf]
      %v1100 = vld [vmem:[%s659 + $0xc] sm:$0xf]
      %v1101 = vld [vmem:[%s662] sm:$0x1]
      %v1103 = vlaneseq
      %v1104 = vshrl.u32 %v1103, 7
      %v1105 = vsub.s32 0, %v1104
      %v1106 = vrot.slane %v1101, %v1105
      %v1112 = vunpack.c.l.b16 %v1097
      %v1113 = vunpack.c.l.b16 %v1098
      %v1114 = vunpack.c.l.b16 %v1099
      %v1115 = vunpack.c.l.b16 %v1100
      %v1116 = vpack.c.b16 %v1113, %v1112
      %v1117 = vpack.c.b16 %v1115, %v1114
      %v1121 = vsel %vm716, %v1096, 0
      %1123 = vmatprep.subr.bf16.mxu0 0
      %1124 = vmatpush1.bf16.msra.mxu0 0
      %1125 = vmatprep.subr.bf16.mxu0 0
      %1126 = vmatpush1.bf16.msra.mxu0 0
      %1127 = vmatprep.subr.bf16.mxu0 0
      %1128 = vmatpush1.bf16.msra.mxu0 0
      %1129 = vmatprep.subr.bf16.mxu0 0
      %1130 = vmatpush1.bf16.msra.mxu0 0
      %1131 = vmatprep.subr.bf16.mxu0 0
      %1132 = vmatpush1.bf16.msra.mxu0 0
      %1133 = vmatprep.subr.bf16.mxu0 0
      %1134 = vmatpush1.bf16.msra.mxu0 0
      %1135 = vmatprep.subr.bf16.mxu0 0
      %1136 = vmatpush1.bf16.msra.mxu0 %v1117
      %1137 = vmatprep.subr.bf16.mxu0 0
      %1138 = vmatpush1.bf16.msra.mxu0 %v1116
      %1139 = vmatprep.subr.bf16.mxu0 0
      %1140 = vmatpush2.bf16.msra.mxu0 0
      %1141 = vmatprep.subr.bf16.mxu0 0
      %1142 = vmatpush2.bf16.msra.mxu0 0
      %1143 = vmatprep.subr.bf16.mxu0 0
      %1144 = vmatpush2.bf16.msra.mxu0 0
      %1145 = vmatprep.subr.bf16.mxu0 0
      %1146 = vmatpush2.bf16.msra.mxu0 0
      %1147 = vmatprep.subr.bf16.mxu0 0
      %1148 = vmatpush2.bf16.msra.mxu0 0
      %1149 = vmatprep.subr.bf16.mxu0 0
      %1150 = vmatpush2.bf16.msra.mxu0 0
      %1151 = vmatprep.subr.bf16.mxu0 0
      %1152 = vmatpush2.bf16.msra.mxu0 0
      %1153 = vmatprep.subr.bf16.mxu0 0
      %1154 = vmatpush2.bf16.msra.mxu0 0
      %1155 = vmatprep.mubr.bf16.mxu0 0
      %1156 = vmatmul.mubr.bf16.gmra.mxu0 %v1121
      %v1157 = vpop.f32.mrf.mxu0
      %v1158 = vadd.f32 %v1106, %v1157
      %v1159 = vpop.f32.mrf.mxu0
      %v1160 = vpop.f32.mrf.mxu0
      %v1161 = vpop.f32.mrf.mxu0
      %1162 = vdwg.mxu0
      %v1163 = vmul.f32 %v1158, 0.5
      %v1164 = vmul.f32 %v1158, 0.70710677
      %v1165 = verf.f32.pop %v1164
      %v1166 = vadd.f32 %v1165, 1.0
      %v1167 = vmul.f32 %v1163, %v1166
      %v1168 = vpack.c.bf16 %v1167, %v1167
      %v1169 = vld [vmem:[%s667] sm:$0xf]
      %v1170 = vld [vmem:[%s667 + $0x4] sm:$0xf]
      %v1171 = vld [vmem:[%s667 + $0x8] sm:$0xf]
      %v1172 = vld [vmem:[%s667 + $0xc] sm:$0xf]
      %v1173 = vld [vmem:[%s667 + $0x10] sm:$0xf]
      %v1174 = vld [vmem:[%s667 + $0x14] sm:$0xf]
      %v1175 = vld [vmem:[%s667 + $0x18] sm:$0xf]
      %v1176 = vld [vmem:[%s667 + $0x1c] sm:$0xf]
      %v1177 = vld [vmem:[%s667 + $0x20] sm:$0xf]
      %v1178 = vld [vmem:[%s667 + $0x24] sm:$0xf]
      %v1179 = vld [vmem:[%s667 + $0x28] sm:$0xf]
      %v1180 = vld [vmem:[%s667 + $0x2c] sm:$0xf]
      %v1181 = vld [vmem:[%s667 + $0x30] sm:$0xf]
      %v1182 = vld [vmem:[%s667 + $0x34] sm:$0xf]
      %v1183 = vld [vmem:[%s667 + $0x38] sm:$0xf]
      %v1184 = vld [vmem:[%s667 + $0x3c] sm:$0xf]
      %v1185 = vld [vmem:[%s670] sm:$0x1]
      %v1187 = vlaneseq
      %v1188 = vshrl.u32 %v1187, 7
      %v1189 = vsub.s32 0, %v1188
      %v1190 = vrot.slane %v1185, %v1189
      %v1208 = vunpack.c.l.b16 %v1169
      %v1209 = vunpack.c.l.b16 %v1170
      %v1210 = vunpack.c.l.b16 %v1171
      %v1211 = vunpack.c.l.b16 %v1172
      %v1212 = vunpack.c.l.b16 %v1173
      %v1213 = vunpack.c.l.b16 %v1174
      %v1214 = vunpack.c.l.b16 %v1175
      %v1215 = vunpack.c.l.b16 %v1176
      %v1216 = vunpack.c.l.b16 %v1177
      %v1217 = vunpack.c.l.b16 %v1178
      %v1218 = vunpack.c.l.b16 %v1179
      %v1219 = vunpack.c.l.b16 %v1180
      %v1220 = vunpack.c.l.b16 %v1181
      %v1221 = vunpack.c.l.b16 %v1182
      %v1222 = vunpack.c.l.b16 %v1183
      %v1223 = vunpack.c.l.b16 %v1184
      %v1224 = vpack.c.b16 %v1209, %v1208
      %v1225 = vpack.c.b16 %v1211, %v1210
      %v1226 = vpack.c.b16 %v1213, %v1212
      %v1227 = vpack.c.b16 %v1215, %v1214
      %v1228 = vpack.c.b16 %v1217, %v1216
      %v1229 = vpack.c.b16 %v1219, %v1218
      %v1230 = vpack.c.b16 %v1221, %v1220
      %v1231 = vpack.c.b16 %v1223, %v1222
      %1240 = vmatprep.subr.bf16.mxu0 0
      %1241 = vmatpush1.bf16.msra.mxu0 %v1231
      %1242 = vmatprep.subr.bf16.mxu0 0
      %1243 = vmatpush1.bf16.msra.mxu0 %v1230
      %1244 = vmatprep.subr.bf16.mxu0 0
      %1245 = vmatpush1.bf16.msra.mxu0 %v1229
      %1246 = vmatprep.subr.bf16.mxu0 0
      %1247 = vmatpush1.bf16.msra.mxu0 %v1228
      %1248 = vmatprep.subr.bf16.mxu0 0
      %1249 = vmatpush1.bf16.msra.mxu0 %v1227
      %1250 = vmatprep.subr.bf16.mxu0 0
      %1251 = vmatpush1.bf16.msra.mxu0 %v1226
      %1252 = vmatprep.subr.bf16.mxu0 0
      %1253 = vmatpush1.bf16.msra.mxu0 %v1225
      %1254 = vmatprep.subr.bf16.mxu0 0
      %1255 = vmatpush1.bf16.msra.mxu0 %v1224
      %1256 = vmatprep.subr.bf16.mxu0 0
      %1257 = vmatpush2.bf16.msra.mxu0 0
      %1258 = vmatprep.subr.bf16.mxu0 0
      %1259 = vmatpush2.bf16.msra.mxu0 0
      %1260 = vmatprep.subr.bf16.mxu0 0
      %1261 = vmatpush2.bf16.msra.mxu0 0
      %1262 = vmatprep.subr.bf16.mxu0 0
      %1263 = vmatpush2.bf16.msra.mxu0 0
      %1264 = vmatprep.subr.bf16.mxu0 0
      %1265 = vmatpush2.bf16.msra.mxu0 0
      %1266 = vmatprep.subr.bf16.mxu0 0
      %1267 = vmatpush2.bf16.msra.mxu0 0
      %1268 = vmatprep.subr.bf16.mxu0 0
      %1269 = vmatpush2.bf16.msra.mxu0 0
      %1270 = vmatprep.subr.bf16.mxu0 0
      %1271 = vmatpush2.bf16.msra.mxu0 0
      %1272 = vmatprep.mubr.bf16.mxu0 0
      %1273 = vmatmul.mubr.bf16.gmra.mxu0 %v1168
      %v1274 = vpop.f32.mrf.mxu0
      %v1275 = vadd.f32 %v1190, %v1274
      %v1276 = vpop.f32.mrf.mxu0
      %v1277 = vpop.f32.mrf.mxu0
      %v1278 = vpop.f32.mrf.mxu0
      %1279 = vdwg.mxu0
      %v1280 = vadd.f32 %v1275, %v1095
      %v1281 = vld [vmem:[%s673] sm:$0x1]
      %v1282 = vld [vmem:[%s676] sm:$0x1]
      %v1283 = vsel %vm716, %v1280, 0.0
      %1284 = vadd.xlane.f32.xlu0 %v1283
      %v1285 = vpop.xlane.xlu0 %1284
      %v1286 = vmul.f32 %v1285, %v1071
      %v1287 = vsub.f32 %v1280, %v1286
      %v1288 = vmul.f32 %v1287, %v1287
      %v1289 = vsel %vm716, %v1288, 0.0
      %1290 = vadd.xlane.f32.xlu0 %v1289
      %v1291 = vpop.xlane.xlu0 %1290
      %v1292 = vmul.f32 %v1291, %v1071
      %v1293 = vadd.f32 %v1292, 1e-12
      %v1294 = vrsqrt.pop %v1293
      %v1295 = vmul.f32 %v1287, %v1294
      %v1297 = vlaneseq
      %v1298 = vshrl.u32 %v1297, 7
      %v1299 = vsub.s32 0, %v1298
      %v1300 = vrot.slane %v1281, %v1299
      %v1302 = vmul.f32 %v1295, %v1300
      %v1304 = vlaneseq
      %v1305 = vshrl.u32 %v1304, 7
      %v1306 = vsub.s32 0, %v1305
      %v1307 = vrot.slane %v1282, %v1306
      %v1309 = vadd.f32 %v1302, %v1307
      %1310 = vst.msk [vmem:[#allocation2] sm:$0xff] %vm716, %v1309
      %p1311 = scmp.eq.s32.totalorder %s30, 1
      // Predicated region
      $region81: #{_lambda_.4} parent=75 // pred_check
        %p1312 = pneg %p1311
      $region82: #{_lambda_.4} parent=75 // pred_check_branch
        %1314 = sbr.rel (%p1312) target = $region84
      $region83: #{_lambda_.4} parent=75 // pred_region
        %v1315 = vpack.c.bf16 %v1309, %v1309
        %vm1316 = vcmask 257024
        %1317 = vst.msk [vmem:[%s680] sm:$0xf] %vm1316, %v1315
      $region84: #{_lambda_.4} parent=75 // pred_fallthru
        _
      %p1318 = scmp.lt.s32.totalorder %s29, 1
      %s1319 = scalar_select %p1318, %s29, 1
      %s1320 = smul.addr %s1319, 4
      %s1321 = scalar_lea.vmem %s14, %s1320
      // Predicated region
      $region85: #{_lambda_.4} parent=75 // pred_check
        %p1322 = pneg %p419
      $region86: #{_lambda_.4} parent=75 // pred_check_branch
        %1324 = sbr.rel (%p1322) target = $region88
      $region87: #{_lambda_.4} parent=75 // pred_region
        _
      $region88: #{_lambda_.4} parent=75 // pred_fallthru
        _
    $region76: #{_lambda_.4} parent=5 // pred_fallthru
      _
    %p1325 = scmp.le.s32.totalorder 2, %s20
    // Predicated region
    $region89: #{_lambda_.4} parent=5 // pred_check
      %p1326 = pneg %p1325
    $region90: #{_lambda_.4} parent=5 // pred_check_branch
      %1328 = sbr.rel (%p1326) target = $region92
    $region91: #{_lambda_.4} parent=5 // pred_region
      %s1329 = ssub.s32 %s20, 2
      // Predicated region
      $region93: #{_lambda_.4} parent=91 // pred_check
        %p1330 = pneg %p425
      $region94: #{_lambda_.4} parent=91 // pred_check_branch
        %1332 = sbr.rel (%p1330) target = $region96
      $region95: #{_lambda_.4} parent=91 // pred_region
        %p1333 = scmp.lt.s32.totalorder %s31, 1
        %s1334 = scalar_select %p1333, %s31, 1
        %s1335 = smul.addr %s1334, 4
        %s1336 = scalar_lea.vmem %s14, %s1335
      $region96: #{_lambda_.4} parent=91 // pred_fallthru
        _
    $region92: #{_lambda_.4} parent=5 // pred_fallthru
      _
  $region6: #{_lambda_.4} parent=0 // loop_footer
    %s24 = sadd.s32 1, %s20
  $region7: #{_lambda_.4} parent=0 // loop_footer_branch
    %19 = sbr.rel target = $region3
  $region8: #{_lambda_.4} parent=0 // loop_exit
    _

</llo_original>
